<compile_context>
chip_gen: v6e
topology: v6e:2x2x1
jax: 0.10.0
libtpu: 0.0.40
codegen_flags: <defaults>
</compile_context>

<pallas_src>
import math

import jax
import jax.numpy as jnp
from jax import lax
from jax.experimental import pallas as pl
from jax.experimental.pallas import tpu as pltpu


def _round_up(x, m):
    return ((x + m - 1) // m) * m


def _cdiv(a, b):
    return (a + b - 1) // b


def _vmem_budget_bytes():
    """Generation-aware VMEM budget: 0.85 x physical per-core capacity.

    Falls back to 0.85 x 64 MiB (v7x-sized, safe everywhere) if the hardware
    query is unavailable.  The try/except only guards the info helper; it
    never masks kernel errors.
    """
    try:
        cap = int(pltpu.get_tpu_info().vmem_capacity_bytes)
        if cap > 0:
            return int(0.85 * cap)
    except Exception:
        pass
    return int(0.85 * (64 << 20))


def _buffered_supported():
    """Feature-detect BlockSpec(pipeline_mode=pl.Buffered(1)) once at import."""
    try:
        pl.BlockSpec((8, 128), lambda i, j: (i, j), pipeline_mode=pl.Buffered(1))
        return True
    except (AttributeError, TypeError):
        return False


_HAS_BUFFERED = _buffered_supported()


def _make_kernel(chunk_sizes, precision):
    """Fused 2-layer MLP tile kernel.

    chunk_sizes: static hidden-dim chunk widths (sum == H_p).  For a single
    chunk the hidden never needs an accumulator; for multiple chunks a
    (tm, tn) f32 VMEM accumulator is used and layer-2 pushes overlap layer-1.
    """
    n_hc = len(chunk_sizes)
    offs = [sum(chunk_sizes[:i]) for i in range(n_hc)]

    if n_hc == 1:
        def kernel(x_ref, w1_ref, b1_ref, w2_ref, b2_ref, o_ref):
            h = jnp.dot(x_ref[...], w1_ref[...],
                        preferred_element_type=jnp.float32, precision=precision)
            h = jnp.maximum(h + b1_ref[...], 0.0)
            y = jnp.dot(h.astype(w2_ref.dtype), w2_ref[...],
                        preferred_element_type=jnp.float32, precision=precision)
            o_ref[...] = jnp.maximum(y + b2_ref[...], 0.0).astype(o_ref.dtype)
        return kernel, False

    def kernel(x_ref, w1_ref, b1_ref, w2_ref, b2_ref, o_ref, acc_ref):
        x = x_ref[...]
        acc_ref[...] = jnp.zeros_like(acc_ref)
        # Static, short, fully-unrolled loop over hidden chunks: avoids
        # materializing the full (tm, H_p) hidden activation in VMEM.
        for lo, sz in zip(offs, chunk_sizes):
            h = jnp.dot(x, w1_ref[:, pl.ds(lo, sz)],
                        preferred_element_type=jnp.float32, precision=precision)
            h = jnp.maximum(h + b1_ref[:, pl.ds(lo, sz)], 0.0)
            acc_ref[...] += jnp.dot(h.astype(w2_ref.dtype),
                                    w2_ref[pl.ds(lo, sz), :],
                                    preferred_element_type=jnp.float32,
                                    precision=precision)
        o_ref[...] = jnp.maximum(acc_ref[...] + b2_ref[...], 0.0).astype(o_ref.dtype)
    return kernel, True


def ex_mlp_forward(x, w1, b1, w2, b2, *, tm=None, hidden_chunk=512,
                   tn_cap=1024, precision=None):
    """x: (B, S, D_in) -> (B, S, D_out).

    w1: (D_in, H), b1: (1,1,H) or (1,H), w2: (H, D_out), b2: (1,1,D_out)/(1,D_out).
    precision: matmul precision (default: HIGHEST for f32 inputs, DEFAULT otherwise).
    """
    B, S, D_in = x.shape
    H = w1.shape[1]
    D_out = w2.shape[1]
    M = B * S
    dt = x.dtype
    isz = jnp.dtype(dt).itemsize
    wsz = jnp.dtype(w1.dtype).itemsize

    if precision is None:
        precision = (lax.Precision.HIGHEST if dt == jnp.float32
                     else lax.Precision.DEFAULT)

    # Lane-dense padding: every feature dim to a multiple of 128.
    D_in_p = _round_up(D_in, 128)
    H_p = _round_up(H, 128)
    # Output tiling: single N tile unless D_out_p would exceed tn_cap.
    tn = min(_round_up(D_out, 128), _round_up(tn_cap, 128))
    D_out_p = _round_up(D_out, tn)
    n_n = D_out_p // tn

    # Static hidden-dim chunk plan (ragged last chunk allowed, all 128-aligned
    # offsets when H_p is — offsets are multiples of hc_max which is 128-aligned).
    hc_max = min(_round_up(hidden_chunk, 128), H_p)
    chunk_sizes = []
    off = 0
    while off < H_p:
        chunk_sizes.append(min(hc_max, H_p - off))
        off += chunk_sizes[-1]
    n_hc = len(chunk_sizes)

    # dtype-aware sublane granularity for the row tile (8/16/32 for 4/2/1-byte).
    sub = max(8, 32 // isz)

    budget = _vmem_budget_bytes()
    weight_factor = 1 if _HAS_BUFFERED else 2          # Buffered(1) -> one copy
    w2_factor = weight_factor if n_n == 1 else 2        # W2/b2 revisited only if n_n == 1

    def need(rows):
        w_bytes = ((D_in_p * H_p + H_p) * wsz * weight_factor
                   + (H_p * tn + tn) * wsz * w2_factor)
        io_bytes = 2 * rows * D_in_p * isz + 2 * rows * tn * isz   # double-buffered tiles
        acc_bytes = rows * tn * 4 if n_hc > 1 else 0
        hidden_bytes = rows * hc_max * (4 + wsz)   # f32 MXU result + cast copy (chunk-wide)
        return w_bytes + io_bytes + acc_bytes + hidden_bytes + (4 << 20)   # headroom

    # Row tile: largest budget-fitting tile, then evened out over M, forcing
    # >=2 grid steps when M allows so v7x's two TensorCores both get work.
    if tm is None:
        tm_cap = sub
        for cand in (1024, 512, 256, 128, 64, 32, 16, 8):
            if cand < sub:
                continue
            if need(cand) <= budget:
                tm_cap = cand
                break
    else:
        tm_cap = max(sub, _round_up(tm, sub))
    n_m = max(_cdiv(M, tm_cap), 2 if M > sub else 1)
    tm = _round_up(_cdiv(M, n_m), sub)
    M_p = _round_up(M, tm)
    n_m = M_p // tm

    vmem_limit = int(min(budget, max(32 << 20, need(tm))))
    # TODO(synk): if the padded weights ever outgrow the VMEM budget, add a
    # hidden-dim grid axis with a pl.when-initialized accumulator instead of
    # whole-weight residency.

    def pad2(a, r, c):
        if a.shape == (r, c):
            return a
        return jnp.pad(a, ((0, r - a.shape[0]), (0, c - a.shape[1])))

    # NOTE: in a real model the padded weights/biases should be padded once at
    # init and cached; here every no-op pad (already-aligned dims) is skipped,
    # and the output slice below is skipped when no padding was added.
    x2 = pad2(x.reshape(M, D_in), M_p, D_in_p)
    w1p = pad2(w1, D_in_p, H_p)
    b1p = pad2(b1.reshape(1, H), 1, H_p)
    w2p = pad2(w2, H_p, D_out_p)
    b2p = pad2(b2.reshape(1, D_out), 1, D_out_p)

    kernel, use_acc = _make_kernel(tuple(chunk_sizes), precision)

    def run(use_buffered):
        wkw = {"pipeline_mode": pl.Buffered(1)} if use_buffered else {}
        # W2/b2 block index changes with j, so only single-buffer them when the
        # N axis is trivial (constant index_map -> truly resident).
        w2kw = wkw if n_n == 1 else {}
        in_specs = [
            pl.BlockSpec((tm, D_in_p), lambda i, j: (i, 0)),            # x row tile
            pl.BlockSpec((D_in_p, H_p), lambda i, j: (0, 0), **wkw),    # W1 (resident)
            pl.BlockSpec((1, H_p), lambda i, j: (0, 0), **wkw),         # b1 (resident)
            pl.BlockSpec((H_p, tn), lambda i, j: (0, j), **w2kw),       # W2 (column tile)
            pl.BlockSpec((1, tn), lambda i, j: (0, j), **w2kw),         # b2
        ]
        out_specs = pl.BlockSpec((tm, tn), lambda i, j: (i, j))
        scratch = [pltpu.VMEM((tm, tn), jnp.float32)] if use_acc else []
        return pl.pallas_call(
            kernel,
            out_shape=jax.ShapeDtypeStruct((M_p, D_out_p), dt),
            grid_spec=pltpu.PrefetchScalarGridSpec(
                num_scalar_prefetch=0,
                grid=(n_m, n_n),
                in_specs=in_specs,
                out_specs=out_specs,
                scratch_shapes=scratch,
            ),
            compiler_params=pltpu.CompilerParams(
                dimension_semantics=("parallel", "parallel"),
                vmem_limit_bytes=vmem_limit),
        )(x2, w1p, b1p, w2p, b2p)

    if _HAS_BUFFERED:
        try:
            out2 = run(True)
        except (TypeError, NotImplementedError, ValueError, pltpu.LoweringException):
            # Narrow fallback: only if pipeline_mode=Buffered(1) is rejected at
            # trace/lowering time; genuine bugs re-raise from the retry.
            out2 = run(False)
    else:
        out2 = run(False)

    if (M_p, D_out_p) != (M, D_out):
        out2 = out2[:M, :D_out]
    return out2.reshape(B, S, D_out)


def init_params(key, input_size, hidden_size, output_size, dtype=jnp.float32):
    """Xavier-normal weights, zero biases; bias shapes (1,1,F) match the torch module."""
    k1, k2 = jax.random.split(key)
    std1 = math.sqrt(2.0 / (input_size + hidden_size))
    std2 = math.sqrt(2.0 / (hidden_size + output_size))
    w1 = (jax.random.normal(k1, (input_size, hidden_size)) * std1).astype(dtype)
    w2 = (jax.random.normal(k2, (hidden_size, output_size)) * std2).astype(dtype)
    b1 = jnp.zeros((1, 1, hidden_size), dtype)
    b2 = jnp.zeros((1, 1, output_size), dtype)
    return w1, b1, w2, b2


def _reference(x, w1, b1, w2, b2, precision):
    h = jnp.maximum(jnp.matmul(x, w1, precision=precision) + b1, 0.0)
    return jnp.maximum(jnp.matmul(h, w2, precision=precision) + b2, 0.0)


if __name__ == "__main__":
    key = jax.random.PRNGKey(0)
    kx, kp, kt = jax.random.split(key, 3)
    P = lax.Precision.HIGHEST   # kernel defaults to HIGHEST for f32 inputs

    # Check 1: small shapes consistent with the module (batch=2, seq=8, in=32,
    # hidden=32, out=16), Xavier weights, zero biases.
    B, S = 2, 8
    input_size, hidden_size, output_size = 32, 32, 16
    x = jax.random.normal(kx, (B, S, input_size), dtype=jnp.float32)
    w1, b1, w2, b2 = init_params(kp, input_size, hidden_size, output_size)
    out = jax.block_until_ready(ex_mlp_forward(x, w1, b1, w2, b2))
    ref = _reference(x, w1, b1, w2, b2, P)
    assert out.shape == (B, S, output_size)
    assert jnp.allclose(out, ref, atol=1e-5, rtol=1e-5)

    # Check 2: ragged M (multi-step row grid), non-128 feature dims, non-zero
    # biases.  Kernel and reference both at explicit HIGHEST precision, so the
    # tolerance is tight (no longer absorbing DEFAULT-precision loss).
    k1, k2, k3, k4, k5 = jax.random.split(kt, 5)
    B2, S2, Din2, H2, Dout2 = 3, 173, 48, 96, 40
    xb = jax.random.normal(k1, (B2, S2, Din2), dtype=jnp.float32)
    w1b = jax.random.normal(k2, (Din2, H2)) * 0.1
    b1b = jax.random.normal(k3, (1, 1, H2)) * 0.1
    w2b = jax.random.normal(k4, (H2, Dout2)) * 0.1
    b2b = jax.random.normal(k5, (1, 1, Dout2)) * 0.1
    outb = jax.block_until_ready(ex_mlp_forward(xb, w1b, b1b, w2b, b2b))
    refb = _reference(xb, w1b, b1b, w2b, b2b, P)
    assert outb.shape == (B2, S2, Dout2)
    assert jnp.allclose(outb, refb, atol=1e-4, rtol=1e-4)

    # Check 3: exercise the in-kernel hidden-dim chunking path (n_hc > 1) with
    # a small chunk size so the accumulator kernel is compiled and verified.
    kc1, kc2, kc3, kc4, kc5 = jax.random.split(jax.random.PRNGKey(1), 5)
    B3, S3, Din3, H3, Dout3 = 2, 8, 64, 192, 24
    xc = jax.random.normal(kc1, (B3, S3, Din3), dtype=jnp.float32)
    w1c = jax.random.normal(kc2, (Din3, H3)) * 0.1
    b1c = jax.random.normal(kc3, (1, 1, H3)) * 0.1
    w2c = jax.random.normal(kc4, (H3, Dout3)) * 0.1
    b2c = jax.random.normal(kc5, (1, 1, Dout3)) * 0.1
    outc = jax.block_until_ready(
        ex_mlp_forward(xc, w1c, b1c, w2c, b2c, hidden_chunk=128))
    refc = _reference(xc, w1c, b1c, w2c, b2c, P)
    assert outc.shape == (B3, S3, Dout3)
    assert jnp.allclose(outc, refc, atol=1e-4, rtol=1e-4)

    print("KERNEL_OK")
</pallas_src>

<mosaic_0001>
module attributes {stable_mosaic.version = 11 : i64} {
  func.func @kernel(%arg0: i32, %arg1: i32, %arg2: memref<8x128xf32, #tpu.memory_space<vmem>>, %arg3: memref<128x128xf32, #tpu.memory_space<vmem>>, %arg4: memref<1x128xf32, #tpu.memory_space<vmem>>, %arg5: memref<128x128xf32, #tpu.memory_space<vmem>>, %arg6: memref<1x128xf32, #tpu.memory_space<vmem>>, %arg7: memref<8x128xf32, #tpu.memory_space<vmem>>) attributes {dimension_semantics = [#tpu.dimension_semantics<parallel>, #tpu.dimension_semantics<parallel>], iteration_bounds = array<i64: 2, 1>, scalar_prefetch = 0 : i64, scratch_operands = 0 : i64, tpu.core_type = #tpu.core_type<tc>, window_params = [{transform_indices = @transform_0, window_bounds = array<i64: 8, 128>}, {pipeline_mode = #tpu.pipeline_mode<synchronous>, transform_indices = @transform_1, window_bounds = array<i64: 128, 128>}, {pipeline_mode = #tpu.pipeline_mode<synchronous>, transform_indices = @transform_2, window_bounds = array<i64: 1, 128>}, {pipeline_mode = #tpu.pipeline_mode<synchronous>, transform_indices = @transform_3, window_bounds = array<i64: 128, 128>}, {pipeline_mode = #tpu.pipeline_mode<synchronous>, transform_indices = @transform_4, window_bounds = array<i64: 1, 128>}, {transform_indices = @transform_5, window_bounds = array<i64: 8, 128>}]} {
    %c0 = arith.constant 0 : index
    %c0_0 = arith.constant 0 : index
    %0 = vector.load %arg2[%c0, %c0_0] : memref<8x128xf32, #tpu.memory_space<vmem>>, vector<8x128xf32>
    %c0_1 = arith.constant 0 : index
    %c0_2 = arith.constant 0 : index
    %1 = vector.load %arg3[%c0_1, %c0_2] : memref<128x128xf32, #tpu.memory_space<vmem>>, vector<128x128xf32>
    %cst = arith.constant dense<0.000000e+00> : vector<8x128xf32>
    %2 = tpu.matmul %0, %1, %cst {dimension_numbers = #tpu.dot_dimension_numbers<[1], [0], [0], [1], [0, 0, 1, 1], [], []>, precision = #tpu.contract_precision<fp32>} : vector<8x128xf32>, vector<128x128xf32>, vector<8x128xf32> -> vector<8x128xf32>
    %c0_3 = arith.constant 0 : index
    %c0_4 = arith.constant 0 : index
    %3 = vector.load %arg4[%c0_3, %c0_4] : memref<1x128xf32, #tpu.memory_space<vmem>>, vector<1x128xf32>
    %4 = vector.broadcast %3 : vector<1x128xf32> to vector<8x128xf32>
    %5 = arith.addf %2, %4 : vector<8x128xf32>
    %cst_5 = arith.constant 0.000000e+00 : f32
    %6 = vector.broadcast %cst_5 : f32 to vector<8x128xf32>
    %7 = arith.maximumf %5, %6 : vector<8x128xf32>
    %c0_6 = arith.constant 0 : index
    %c0_7 = arith.constant 0 : index
    %8 = vector.load %arg5[%c0_6, %c0_7] : memref<128x128xf32, #tpu.memory_space<vmem>>, vector<128x128xf32>
    %cst_8 = arith.constant dense<0.000000e+00> : vector<8x128xf32>
    %9 = tpu.matmul %7, %8, %cst_8 {dimension_numbers = #tpu.dot_dimension_numbers<[1], [0], [0], [1], [0, 0, 1, 1], [], []>, precision = #tpu.contract_precision<fp32>} : vector<8x128xf32>, vector<128x128xf32>, vector<8x128xf32> -> vector<8x128xf32>
    %c0_9 = arith.constant 0 : index
    %c0_10 = arith.constant 0 : index
    %10 = vector.load %arg6[%c0_9, %c0_10] : memref<1x128xf32, #tpu.memory_space<vmem>>, vector<1x128xf32>
    %11 = vector.broadcast %10 : vector<1x128xf32> to vector<8x128xf32>
    %12 = arith.addf %9, %11 : vector<8x128xf32>
    %cst_11 = arith.constant 0.000000e+00 : f32
    %13 = vector.broadcast %cst_11 : f32 to vector<8x128xf32>
    %14 = arith.maximumf %12, %13 : vector<8x128xf32>
    %c0_12 = arith.constant 0 : index
    %c0_13 = arith.constant 0 : index
    %15 = vector.load %arg7[%c0_12, %c0_13] : memref<8x128xf32, #tpu.memory_space<vmem>>, vector<8x128xf32>
    tpu.vector_store %arg7[%c0_12, %c0_13], %14 {strides = array<i32>} : memref<8x128xf32, #tpu.memory_space<vmem>>, vector<8x128xf32>,
    return
  }
  func.func @transform_0(%arg0: i32, %arg1: i32) -> (i32, i32) {
    %c0_i32 = arith.constant 0 : i32
    %c0_i32_0 = arith.constant 0 : i32
    return %arg0, %c0_i32 : i32, i32
  }
  func.func @transform_1(%arg0: i32, %arg1: i32) -> (i32, i32) {
    %c0_i32 = arith.constant 0 : i32
    %c0_i32_0 = arith.constant 0 : i32
    %c0_i32_1 = arith.constant 0 : i32
    return %c0_i32, %c0_i32_0 : i32, i32
  }
  func.func @transform_2(%arg0: i32, %arg1: i32) -> (i32, i32) {
    %c0_i32 = arith.constant 0 : i32
    %c0_i32_0 = arith.constant 0 : i32
    %c0_i32_1 = arith.constant 0 : i32
    return %c0_i32, %c0_i32_0 : i32, i32
  }
  func.func @transform_3(%arg0: i32, %arg1: i32) -> (i32, i32) {
    %c0_i32 = arith.constant 0 : i32
    %c0_i32_0 = arith.constant 0 : i32
    return %c0_i32, %arg1 : i32, i32
  }
  func.func @transform_4(%arg0: i32, %arg1: i32) -> (i32, i32) {
    %c0_i32 = arith.constant 0 : i32
    %c0_i32_0 = arith.constant 0 : i32
    return %c0_i32, %arg1 : i32, i32
  }
  func.func @transform_5(%arg0: i32, %arg1: i32) -> (i32, i32) {
    %c0_i32 = arith.constant 0 : i32
    return %arg0, %arg1 : i32, i32
  }
}

</mosaic_0001>

<llo_original>
// kernel: tpu_custom_call.1
$region0: #{tpu_custom_call.1}
  #allocation0 [shape = 'u32[]', space=smem, size = 0x4, offset = 0x4, fixed_abs, tag = 'smem constant byte address 0x4 - core index']
  #allocation1 [shape = 'u32[144,128]{1,0:T(1,128)}', space=vmem, size = 0x12000, scoped, tag = 'internal scratch']
  %s0 = inlined_call_operand.hbm [shape: f32[16,128], index: 0, kind: input, shape index: {}]
  %s1 = inlined_call_operand.hbm [shape: f32[128,128], index: 1, kind: input, shape index: {}]
  %s2 = inlined_call_operand.vmem [shape: f32[1,128], index: 2, kind: input, shape index: {}]
  %s3 = inlined_call_operand.hbm [shape: f32[128,128], index: 3, kind: input, shape index: {}]
  %s4 = inlined_call_operand.vmem [shape: f32[1,128], index: 4, kind: input, shape index: {}]
  %s5 = inlined_call_operand.hbm [shape: f32[16,128], index: 5, kind: output, shape index: {}]
  %s6 = sld [smem:[#allocation0]]
  $region65: #{tpu_custom_call.1} parent=0
    _
  %s8 = ssub.s32 1, %s6
  %s9 = scalar_select 0, %s8, %s6
  $region1: #{tpu_custom_call.1} parent=0
    #allocation2 [shape = 'u8[8192]{0}', space=vmem, size = 0x2000, scoped, tag = 'input window, operand 0']
    #allocation3 [shape = 's32[2]{0}', space=sflag, size = 0x8, scoped, tag = 'scoped memory for tpu_custom_call.1']
    #allocation4 [shape = 's32[2]{0}', space=sflag, size = 0x8, scoped, tag = 'scoped memory for tpu_custom_call.1']
    #allocation5 [shape = 'u8[65536]{0}', space=vmem, size = 0x10000, scoped, tag = 'input window, operand 1, single buffered']
    #allocation6 [shape = 's32[1]{0}', space=sflag, size = 0x4, scoped, tag = 'scoped memory for tpu_custom_call.1']
    #allocation7 [shape = 'u8[65536]{0}', space=vmem, size = 0x10000, scoped, tag = 'input window, operand 3, single buffered']
    #allocation8 [shape = 'u8[8192]{0}', space=vmem, size = 0x2000, scoped, tag = 'output window, operand 0']
    %10 = vsyncpa [#allocation3], 0
    %s11 = scalar_lea.sflag [#allocation3], 1
    %12 = vsyncpa %s11, 0
    %13 = vsyncpa [#allocation6], 0
    %14 = vsyncpa [#allocation4], 0
    %s15 = scalar_lea.sflag [#allocation4], 1
    %16 = vsyncpa %s15, 0
    loop: start=0, step=1, limit=4
    $region2: #{tpu_custom_call.1} parent=1 // loop_pre_header
      _
    $region3: #{tpu_custom_call.1} parent=1 // loop_header
      %s18 = sphi 0, %s22
      %p19 = scmp.ge.s32.totalorder %s18, 4
      %s25 = sphi 0, %s37
      %s26 = sphi 0, %s33
      %s27 = sphi 0, %s25
      %s28 = sphi 0, %s26
      %s29 = sphi 0, %s27
      %s30 = sphi 0, %s28
      %s40 = sphi 0, %s42
      %s43 = sphi 0, %s40
      %s44 = sphi 0, %s43
      %s60 = sphi 0, %s44
      %s64 = sphi 0, %s64
      %s66 = sphi 0, %s64
      %s67 = sphi 0, %s66
      %s81 = sphi 0, %s67
      %s85 = sphi 0, %s85
      %s87 = sphi 0, %s85
      %s88 = sphi 0, %s87
      %s102 = sphi 0, %s88
      %s108 = sphi 0, %s110
      %s111 = sphi 0, %s108
      %s112 = sphi 0, %s111
      %s128 = sphi 0, %s112
      %s134 = sphi 0, %s136
      %s137 = sphi 0, %s134
      %s138 = sphi 0, %s137
      %s154 = sphi 0, %s138
      %s162 = sphi 0, %s164
      %s165 = sphi 0, %s162
      %s166 = sphi 0, %s165
      %s182 = sphi 0, %s166
    $region4: #{tpu_custom_call.1} parent=1 // loop_header_branch
      %21 = sbr.rel (%p19) target = $region8
    $region5: #{tpu_custom_call.1} parent=1 // loop_body
      %s23 = ssub.s32 %s18, 1
      %s24 = ssub.s32 %s18, 2
      %s31 = sadd.s32 1, %s26
      %p32 = scmp.ge.s32.totalorder %s31, 1
      %s33 = scalar_select %p32, 0, %s31
      %s34 = sadd.s32 1, %s25
      %s35 = scalar_select %p32, %s34, %s25
      %p36 = scmp.ge.s32.totalorder %s35, 2
      %s37 = scalar_select %p36, 0, %s35
      %s38 = ssub.s32 %s25, %s37
      %p39 = scmp.eq.s32.totalorder %s38, 0
      %s41 = sadd.s32 %s40, 1
      %s42 = scalar_select %p39, %s40, %s41
      %p45 = pneg %p39
      %p46 = scmp.eq.s32.totalorder %s18, 1
      %p47 = por %p45, %p46
      %p48 = scmp.ne.s32.totalorder %s40, %s43
      %p49 = scmp.eq.s32.totalorder %s18, 0
      %p50 = por %p48, %p49
      %p51 = scmp.ne.s32.totalorder %s40, %s43
      %p52 = scmp.eq.s32.totalorder %s23, 1
      %p53 = por %p51, %p52
      %p54 = scmp.ne.s32.totalorder %s43, %s44
      %p55 = scmp.eq.s32.totalorder %s23, 0
      %p56 = por %p54, %p55
      %p57 = scmp.ne.s32.totalorder %s43, %s44
      %p58 = scmp.eq.s32.totalorder %s24, 1
      %p59 = por %p57, %p58
      %p61 = scmp.ne.s32.totalorder %s44, %s60
      %p62 = scmp.eq.s32.totalorder %s24, 0
      %p63 = por %p61, %p62
      %s65 = sadd.s32 %s64, 1
      %p68 = scmp.eq.s32.totalorder %s18, 1
      %p69 = scmp.ne.s32.totalorder %s64, %s66
      %p70 = scmp.eq.s32.totalorder %s18, 0
      %p71 = por %p69, %p70
      %p72 = scmp.ne.s32.totalorder %s64, %s66
      %p73 = scmp.eq.s32.totalorder %s23, 1
      %p74 = por %p72, %p73
      %p75 = scmp.ne.s32.totalorder %s66, %s67
      %p76 = scmp.eq.s32.totalorder %s23, 0
      %p77 = por %p75, %p76
      %p78 = scmp.ne.s32.totalorder %s66, %s67
      %p79 = scmp.eq.s32.totalorder %s24, 1
      %p80 = por %p78, %p79
      %p82 = scmp.ne.s32.totalorder %s67, %s81
      %p83 = scmp.eq.s32.totalorder %s24, 0
      %p84 = por %p82, %p83
      %s86 = sadd.s32 %s85, 1
      %p89 = scmp.eq.s32.totalorder %s18, 1
      %p90 = scmp.ne.s32.totalorder %s85, %s87
      %p91 = scmp.eq.s32.totalorder %s18, 0
      %p92 = por %p90, %p91
      %p93 = scmp.ne.s32.totalorder %s85, %s87
      %p94 = scmp.eq.s32.totalorder %s23, 1
      %p95 = por %p93, %p94
      %p96 = scmp.ne.s32.totalorder %s87, %s88
      %p97 = scmp.eq.s32.totalorder %s23, 0
      %p98 = por %p96, %p97
      %p99 = scmp.ne.s32.totalorder %s87, %s88
      %p100 = scmp.eq.s32.totalorder %s24, 1
      %p101 = por %p99, %p100
      %p103 = scmp.ne.s32.totalorder %s88, %s102
      %p104 = scmp.eq.s32.totalorder %s24, 0
      %p105 = por %p103, %p104
      %s106 = ssub.s32 %s26, %s33
      %p107 = scmp.eq.s32.totalorder %s106, 0
      %s109 = sadd.s32 %s108, 1
      %s110 = scalar_select %p107, %s108, %s109
      %p113 = pneg %p107
      %p114 = scmp.eq.s32.totalorder %s18, 1
      %p115 = por %p113, %p114
      %p116 = scmp.ne.s32.totalorder %s108, %s111
      %p117 = scmp.eq.s32.totalorder %s18, 0
      %p118 = por %p116, %p117
      %p119 = scmp.ne.s32.totalorder %s108, %s111
      %p120 = scmp.eq.s32.totalorder %s23, 1
      %p121 = por %p119, %p120
      %p122 = scmp.ne.s32.totalorder %s111, %s112
      %p123 = scmp.eq.s32.totalorder %s23, 0
      %p124 = por %p122, %p123
      %p125 = scmp.ne.s32.totalorder %s111, %s112
      %p126 = scmp.eq.s32.totalorder %s24, 1
      %p127 = por %p125, %p126
      %p129 = scmp.ne.s32.totalorder %s112, %s128
      %p130 = scmp.eq.s32.totalorder %s24, 0
      %p131 = por %p129, %p130
      %s132 = ssub.s32 %s26, %s33
      %p133 = scmp.eq.s32.totalorder %s132, 0
      %s135 = sadd.s32 %s134, 1
      %s136 = scalar_select %p133, %s134, %s135
      %p139 = pneg %p133
      %p140 = scmp.eq.s32.totalorder %s18, 1
      %p141 = por %p139, %p140
      %p142 = scmp.ne.s32.totalorder %s134, %s137
      %p143 = scmp.eq.s32.totalorder %s18, 0
      %p144 = por %p142, %p143
      %p145 = scmp.ne.s32.totalorder %s134, %s137
      %p146 = scmp.eq.s32.totalorder %s23, 1
      %p147 = por %p145, %p146
      %p148 = scmp.ne.s32.totalorder %s137, %s138
      %p149 = scmp.eq.s32.totalorder %s23, 0
      %p150 = por %p148, %p149
      %p151 = scmp.ne.s32.totalorder %s137, %s138
      %p152 = scmp.eq.s32.totalorder %s24, 1
      %p153 = por %p151, %p152
      %p155 = scmp.ne.s32.totalorder %s138, %s154
      %p156 = scmp.eq.s32.totalorder %s24, 0
      %p157 = por %p155, %p156
      %s158 = ssub.s32 %s25, %s37
      %s159 = ssub.s32 %s26, %s33
      %s160 = sor.u32 %s158, %s159
      %p161 = scmp.eq.s32.totalorder %s160, 0
      %s163 = sadd.s32 %s162, 1
      %s164 = scalar_select %p161, %s162, %s163
      %p167 = pneg %p161
      %p168 = scmp.eq.s32.totalorder %s18, 1
      %p169 = por %p167, %p168
      %p170 = scmp.ne.s32.totalorder %s162, %s165
      %p171 = scmp.eq.s32.totalorder %s18, 0
      %p172 = por %p170, %p171
      %p173 = scmp.ne.s32.totalorder %s162, %s165
      %p174 = scmp.eq.s32.totalorder %s23, 1
      %p175 = por %p173, %p174
      %p176 = scmp.ne.s32.totalorder %s165, %s166
      %p177 = scmp.eq.s32.totalorder %s23, 0
      %p178 = por %p176, %p177
      %p179 = scmp.ne.s32.totalorder %s165, %s166
      %p180 = scmp.eq.s32.totalorder %s24, 1
      %p181 = por %p179, %p180
      %p183 = scmp.ne.s32.totalorder %s166, %s182
      %p184 = scmp.eq.s32.totalorder %s24, 0
      %p185 = por %p183, %p184
      %p186 = scmp.le.s32.totalorder 1, %s18
      %p187 = scmp.lt.s32.totalorder %s18, 3
      %p188 = pnand %p186, %p187
      %p189 = pneg %p188
      // Predicated region
      $region9: #{tpu_custom_call.1} parent=5 // pred_check
        _
      $region10: #{tpu_custom_call.1} parent=5 // pred_check_branch
        %191 = sbr.rel (%p188) target = $region12
      $region11: #{tpu_custom_call.1} parent=5 // pred_region
        %s192 = ssub.s32 %s18, 1
        // Predicated region
        $region13: #{tpu_custom_call.1} parent=11 // pred_check
          %p193 = pneg %p77
        $region14: #{tpu_custom_call.1} parent=11 // pred_check_branch
          %195 = sbr.rel (%p193) target = $region16
        $region15: #{tpu_custom_call.1} parent=11 // pred_region
          %s197 = ssub.s32 2048, 2048
          %198 = vsyncadd [#allocation6], %s197
          %s199 = sshll.u32 [#allocation5], 4
          %s200 = int_to_ptr.vmem [resolvable:$true] %s199
          %205 = dma.hbm_to_vmem [thread:$0]  %s1, 2048, %s200, [#allocation6], 128, 128, 8
        $region16: #{tpu_custom_call.1} parent=11 // pred_fallthru
          _
        // Predicated region
        $region17: #{tpu_custom_call.1} parent=11 // pred_check
          %p206 = pneg %p98
        $region18: #{tpu_custom_call.1} parent=11 // pred_check_branch
          %208 = sbr.rel (%p206) target = $region20
        $region19: #{tpu_custom_call.1} parent=11 // pred_region
          _
        $region20: #{tpu_custom_call.1} parent=11 // pred_fallthru
          _
        // Predicated region
        $region21: #{tpu_custom_call.1} parent=11 // pred_check
          %p209 = pneg %p124
        $region22: #{tpu_custom_call.1} parent=11 // pred_check_branch
          %211 = sbr.rel (%p209) target = $region24
        $region23: #{tpu_custom_call.1} parent=11 // pred_region
          %s213 = ssub.s32 2048, 2048
          %214 = vsyncadd [#allocation6], %s213
          %s215 = smul.addr %s28, 128
          %s216 = scalar_lea.hbm %s3, %s215
          %s217 = sshll.u32 [#allocation7], 4
          %s218 = int_to_ptr.vmem [resolvable:$true] %s217
          %223 = dma.hbm_to_vmem [thread:$0]  %s216, 2048, %s218, [#allocation6], 128, 128, 8
        $region24: #{tpu_custom_call.1} parent=11 // pred_fallthru
          _
        // Predicated region
        $region25: #{tpu_custom_call.1} parent=11 // pred_check
          %p224 = pneg %p150
        $region26: #{tpu_custom_call.1} parent=11 // pred_check_branch
          %226 = sbr.rel (%p224) target = $region28
        $region27: #{tpu_custom_call.1} parent=11 // pred_region
          %p227 = scmp.lt.s32.totalorder %s28, 0
          %s228 = scalar_select %p227, %s28, 0
          %s229 = scalar_lea.vmem %s4, %s228
        $region28: #{tpu_custom_call.1} parent=11 // pred_fallthru
          _
      $region12: #{tpu_custom_call.1} parent=5 // pred_fallthru
        _
      %p230 = scmp.lt.s32.totalorder %s18, 2
      // Predicated region
      $region29: #{tpu_custom_call.1} parent=5 // pred_check
        %p231 = pneg %p230
      $region30: #{tpu_custom_call.1} parent=5 // pred_check_branch
        %233 = sbr.rel (%p231) target = $region32
      $region31: #{tpu_custom_call.1} parent=5 // pred_region
        // Predicated region
        $region33: #{tpu_custom_call.1} parent=31 // pred_check
          %p234 = pneg %p50
        $region34: #{tpu_custom_call.1} parent=31 // pred_check_branch
          %236 = sbr.rel (%p234) target = $region36
        $region35: #{tpu_custom_call.1} parent=31 // pred_region
          %s237 = sand.u32 %s40, 1
          %s238 = scalar_lea.sflag [#allocation3], %s237
          %s239 = sand.u32 %s40, 1
          %s240 = smul.addr %s239, 8
          %s241 = scalar_lea.vmem [#allocation2], %s240
          %s243 = ssub.s32 128, 128
          %244 = vsyncadd %s238, %s243
          %s245 = smul.addr %s25, 128
          %s246 = scalar_lea.hbm %s0, %s245
          %s248 = sshll.u32 %s241, 4
          %s249 = int_to_ptr.vmem [resolvable:$true] %s248
          %251 = dma.hbm_to_vmem [thread:$0]  %s246, 128, %s249, %s238
        $region36: #{tpu_custom_call.1} parent=31 // pred_fallthru
          _
      $region32: #{tpu_custom_call.1} parent=5 // pred_fallthru
        _
      %p252 = scmp.le.s32.totalorder 1, %s18
      %p253 = scmp.lt.s32.totalorder %s18, 3
      %p254 = pnand %p252, %p253
      %p255 = pneg %p254
      // Predicated region
      $region37: #{tpu_custom_call.1} parent=5 // pred_check
        _
      $region38: #{tpu_custom_call.1} parent=5 // pred_check_branch
        %257 = sbr.rel (%p254) target = $region40
      $region39: #{tpu_custom_call.1} parent=5 // pred_region
        %s258 = ssub.s32 %s18, 1
        %s259 = sand.u32 %s43, 1
        %s260 = scalar_lea.sflag [#allocation3], %s259
        %s261 = sand.u32 %s43, 1
        %s262 = smul.addr %s261, 8
        %s263 = scalar_lea.vmem [#allocation2], %s262
        // Predicated region
        $region41: #{tpu_custom_call.1} parent=39 // pred_check
          %p264 = pneg %p56
        $region42: #{tpu_custom_call.1} parent=39 // pred_check_branch
          %266 = sbr.rel (%p264) target = $region44
        $region43: #{tpu_custom_call.1} parent=39 // pred_region
          %267 = dma.done %s260, 128
        $region44: #{tpu_custom_call.1} parent=39 // pred_fallthru
          _
        // Predicated region
        $region45: #{tpu_custom_call.1} parent=39 // pred_check
          %p268 = pneg %p77
        $region46: #{tpu_custom_call.1} parent=39 // pred_check_branch
          %270 = sbr.rel (%p268) target = $region48
        $region47: #{tpu_custom_call.1} parent=39 // pred_region
          %271 = dma.done [#allocation6], 2048
        $region48: #{tpu_custom_call.1} parent=39 // pred_fallthru
          _
        // Predicated region
        $region49: #{tpu_custom_call.1} parent=39 // pred_check
          %p272 = pneg %p124
        $region50: #{tpu_custom_call.1} parent=39 // pred_check_branch
          %274 = sbr.rel (%p272) target = $region52
        $region51: #{tpu_custom_call.1} parent=39 // pred_region
          %275 = dma.done [#allocation6], 2048
        $region52: #{tpu_custom_call.1} parent=39 // pred_fallthru
          _
        %s276 = sand.u32 %s43, 1
        %s277 = scalar_lea.sflag [#allocation3], %s276
        %s278 = sand.u32 %s43, 1
        %s279 = smul.addr %s278, 8
        %s280 = scalar_lea.vmem [#allocation2], %s279
        %p281 = pneg %p56
        %p282 = pneg %p53
        %p283 = pneg %p77
        %p284 = pneg %p74
        %p285 = pneg %p98
        %p286 = pneg %p95
        %p287 = pneg %p124
        %p288 = pneg %p121
        %p289 = scmp.lt.s32.totalorder %s28, 0
        %s290 = scalar_select %p289, %s28, 0
        %s291 = scalar_lea.vmem %s4, %s290
        %p292 = pneg %p150
        %p293 = pneg %p147
        %p294 = pneg %p178
        %p295 = pneg %p175
        %s296 = sand.u32 %s165, 1
        %s297 = scalar_lea.sflag [#allocation4], %s296
        %s298 = sand.u32 %s165, 1
        %s299 = smul.addr %s298, 8
        %s300 = scalar_lea.vmem [#allocation8], %s299
        %p301 = scmp.lt.s32.totalorder %s28, 0
        %s302 = scalar_select %p301, %s28, 0
        %s303 = scalar_lea.vmem %s4, %s302
        %v304 = vld [vmem:[%s263] sm:$0xff]
        %v305 = vld [vmem:[#allocation5] sm:$0xff]
        %v306 = vld [vmem:[#allocation5 + $0x8] sm:$0xff]
        %v307 = vld [vmem:[#allocation5 + $0x10] sm:$0xff]
        %v308 = vld [vmem:[#allocation5 + $0x18] sm:$0xff]
        %v309 = vld [vmem:[#allocation5 + $0x20] sm:$0xff]
        %v310 = vld [vmem:[#allocation5 + $0x28] sm:$0xff]
        %v311 = vld [vmem:[#allocation5 + $0x30] sm:$0xff]
        %v312 = vld [vmem:[#allocation5 + $0x38] sm:$0xff]
        %v313 = vld [vmem:[#allocation5 + $0x40] sm:$0xff]
        %v314 = vld [vmem:[#allocation5 + $0x48] sm:$0xff]
        %v315 = vld [vmem:[#allocation5 + $0x50] sm:$0xff]
        %v316 = vld [vmem:[#allocation5 + $0x58] sm:$0xff]
        %v317 = vld [vmem:[#allocation5 + $0x60] sm:$0xff]
        %v318 = vld [vmem:[#allocation5 + $0x68] sm:$0xff]
        %v319 = vld [vmem:[#allocation5 + $0x70] sm:$0xff]
        %v320 = vld [vmem:[#allocation5 + $0x78] sm:$0xff]
        %v321 = vld [vmem:[%s2] sm:$0x1]
        %v323 = vlaneseq
        %v324 = vshrl.u32 %v323, 7
        %v325 = vsub.s32 0, %v324
        %v326 = vrot.slane %v321, %v325
        %328 = vmatprep.subr.mxu0 0.0
        %v329 = vand.u32 %v320, 4294901760
        %330 = vmatpush1.msra.mxu0 %v329
        %331 = vmatprep.subr.mxu0 0.0
        %v332 = vand.u32 %v319, 4294901760
        %333 = vmatpush1.msra.mxu0 %v332
        %334 = vmatprep.subr.mxu0 0.0
        %v335 = vand.u32 %v318, 4294901760
        %336 = vmatpush1.msra.mxu0 %v335
        %337 = vmatprep.subr.mxu0 0.0
        %v338 = vand.u32 %v317, 4294901760
        %339 = vmatpush1.msra.mxu0 %v338
        %340 = vmatprep.subr.mxu0 0.0
        %v341 = vand.u32 %v316, 4294901760
        %342 = vmatpush1.msra.mxu0 %v341
        %343 = vmatprep.subr.mxu0 0.0
        %v344 = vand.u32 %v315, 4294901760
        %345 = vmatpush1.msra.mxu0 %v344
        %346 = vmatprep.subr.mxu0 0.0
        %v347 = vand.u32 %v314, 4294901760
        %348 = vmatpush1.msra.mxu0 %v347
        %349 = vmatprep.subr.mxu0 0.0
        %v350 = vand.u32 %v313, 4294901760
        %351 = vmatpush1.msra.mxu0 %v350
        %352 = vmatprep.subr.mxu0 0.0
        %v353 = vand.u32 %v312, 4294901760
        %354 = vmatpush1.msra.mxu0 %v353
        %355 = vmatprep.subr.mxu0 0.0
        %v356 = vand.u32 %v311, 4294901760
        %357 = vmatpush1.msra.mxu0 %v356
        %358 = vmatprep.subr.mxu0 0.0
        %v359 = vand.u32 %v310, 4294901760
        %360 = vmatpush1.msra.mxu0 %v359
        %361 = vmatprep.subr.mxu0 0.0
        %v362 = vand.u32 %v309, 4294901760
        %363 = vmatpush1.msra.mxu0 %v362
        %364 = vmatprep.subr.mxu0 0.0
        %v365 = vand.u32 %v308, 4294901760
        %366 = vmatpush1.msra.mxu0 %v365
        %367 = vmatprep.subr.mxu0 0.0
        %v368 = vand.u32 %v307, 4294901760
        %369 = vmatpush1.msra.mxu0 %v368
        %370 = vmatprep.subr.mxu0 0.0
        %v371 = vand.u32 %v306, 4294901760
        %372 = vmatpush1.msra.mxu0 %v371
        %373 = vmatprep.subr.mxu0 0.0
        %v374 = vand.u32 %v305, 4294901760
        %375 = vmatpush1.msra.mxu0 %v374
        %376 = vmatprep.subr.mxu0 0.0
        %377 = vmatpush2.msra.mxu0 0.0
        %378 = vmatprep.subr.mxu0 0.0
        %379 = vmatpush2.msra.mxu0 0.0
        %380 = vmatprep.subr.mxu0 0.0
        %381 = vmatpush2.msra.mxu0 0.0
        %382 = vmatprep.subr.mxu0 0.0
        %383 = vmatpush2.msra.mxu0 0.0
        %384 = vmatprep.subr.mxu0 0.0
        %385 = vmatpush2.msra.mxu0 0.0
        %386 = vmatprep.subr.mxu0 0.0
        %387 = vmatpush2.msra.mxu0 0.0
        %388 = vmatprep.subr.mxu0 0.0
        %389 = vmatpush2.msra.mxu0 0.0
        %390 = vmatprep.subr.mxu0 0.0
        %391 = vmatpush2.msra.mxu0 0.0
        %392 = vmatprep.subr.mxu0 0.0
        %393 = vmatpush2.msra.mxu0 0.0
        %394 = vmatprep.subr.mxu0 0.0
        %395 = vmatpush2.msra.mxu0 0.0
        %396 = vmatprep.subr.mxu0 0.0
        %397 = vmatpush2.msra.mxu0 0.0
        %398 = vmatprep.subr.mxu0 0.0
        %399 = vmatpush2.msra.mxu0 0.0
        %400 = vmatprep.subr.mxu0 0.0
        %401 = vmatpush2.msra.mxu0 0.0
        %402 = vmatprep.subr.mxu0 0.0
        %403 = vmatpush2.msra.mxu0 0.0
        %404 = vmatprep.subr.mxu0 0.0
        %405 = vmatpush2.msra.mxu0 0.0
        %406 = vmatprep.subr.mxu0 0.0
        %407 = vmatpush2.msra.mxu0 0.0
        %408 = vmatprep.mubr.f32.mxu0 0.0
        %v409 = vand.u32 %v304, 4294901760
        %v410 = vsub.f32 %v304, %v409
        %v411 = vand.u32 %v410, 4294901760
        %v412 = vsub.f32 %v410, %v411
        %v413 = vand.u32 %v412, 4294901760
        %414 = vmatmul.mubr.f32.gmra.mxu0 %v413
        %v415 = vpop.f32.mrf.mxu0
        %v416 = vadd.f32 %v326, %v415
        %v417 = vpop.f32.mrf.mxu0
        %418 = vdwg.mxu0
        %419 = vmatprep.subr.mxu0 0.0
        %v420 = vand.u32 %v320, 4294901760
        %v421 = vsub.f32 %v320, %v420
        %v422 = vand.u32 %v421, 4294901760
        %v423 = vsub.f32 %v421, %v422
        %v424 = vand.u32 %v423, 4294901760
        %425 = vmatpush1.msra.mxu0 %v424
        %426 = vmatprep.subr.mxu0 0.0
        %v427 = vand.u32 %v319, 4294901760
        %v428 = vsub.f32 %v319, %v427
        %v429 = vand.u32 %v428, 4294901760
        %v430 = vsub.f32 %v428, %v429
        %v431 = vand.u32 %v430, 4294901760
        %432 = vmatpush1.msra.mxu0 %v431
        %433 = vmatprep.subr.mxu0 0.0
        %v434 = vand.u32 %v318, 4294901760
        %v435 = vsub.f32 %v318, %v434
        %v436 = vand.u32 %v435, 4294901760
        %v437 = vsub.f32 %v435, %v436
        %v438 = vand.u32 %v437, 4294901760
        %439 = vmatpush1.msra.mxu0 %v438
        %440 = vmatprep.subr.mxu0 0.0
        %v441 = vand.u32 %v317, 4294901760
        %v442 = vsub.f32 %v317, %v441
        %v443 = vand.u32 %v442, 4294901760
        %v444 = vsub.f32 %v442, %v443
        %v445 = vand.u32 %v444, 4294901760
        %446 = vmatpush1.msra.mxu0 %v445
        %447 = vmatprep.subr.mxu0 0.0
        %v448 = vand.u32 %v316, 4294901760
        %v449 = vsub.f32 %v316, %v448
        %v450 = vand.u32 %v449, 4294901760
        %v451 = vsub.f32 %v449, %v450
        %v452 = vand.u32 %v451, 4294901760
        %453 = vmatpush1.msra.mxu0 %v452
        %454 = vmatprep.subr.mxu0 0.0
        %v455 = vand.u32 %v315, 4294901760
        %v456 = vsub.f32 %v315, %v455
        %v457 = vand.u32 %v456, 4294901760
        %v458 = vsub.f32 %v456, %v457
        %v459 = vand.u32 %v458, 4294901760
        %460 = vmatpush1.msra.mxu0 %v459
        %461 = vmatprep.subr.mxu0 0.0
        %v462 = vand.u32 %v314, 4294901760
        %v463 = vsub.f32 %v314, %v462
        %v464 = vand.u32 %v463, 4294901760
        %v465 = vsub.f32 %v463, %v464
        %v466 = vand.u32 %v465, 4294901760
        %467 = vmatpush1.msra.mxu0 %v466
        %468 = vmatprep.subr.mxu0 0.0
        %v469 = vand.u32 %v313, 4294901760
        %v470 = vsub.f32 %v313, %v469
        %v471 = vand.u32 %v470, 4294901760
        %v472 = vsub.f32 %v470, %v471
        %v473 = vand.u32 %v472, 4294901760
        %474 = vmatpush1.msra.mxu0 %v473
        %475 = vmatprep.subr.mxu0 0.0
        %v476 = vand.u32 %v312, 4294901760
        %v477 = vsub.f32 %v312, %v476
        %v478 = vand.u32 %v477, 4294901760
        %v479 = vsub.f32 %v477, %v478
        %v480 = vand.u32 %v479, 4294901760
        %481 = vmatpush1.msra.mxu0 %v480
        %482 = vmatprep.subr.mxu0 0.0
        %v483 = vand.u32 %v311, 4294901760
        %v484 = vsub.f32 %v311, %v483
        %v485 = vand.u32 %v484, 4294901760
        %v486 = vsub.f32 %v484, %v485
        %v487 = vand.u32 %v486, 4294901760
        %488 = vmatpush1.msra.mxu0 %v487
        %489 = vmatprep.subr.mxu0 0.0
        %v490 = vand.u32 %v310, 4294901760
        %v491 = vsub.f32 %v310, %v490
        %v492 = vand.u32 %v491, 4294901760
        %v493 = vsub.f32 %v491, %v492
        %v494 = vand.u32 %v493, 4294901760
        %495 = vmatpush1.msra.mxu0 %v494
        %496 = vmatprep.subr.mxu0 0.0
        %v497 = vand.u32 %v309, 4294901760
        %v498 = vsub.f32 %v309, %v497
        %v499 = vand.u32 %v498, 4294901760
        %v500 = vsub.f32 %v498, %v499
        %v501 = vand.u32 %v500, 4294901760
        %502 = vmatpush1.msra.mxu0 %v501
        %503 = vmatprep.subr.mxu0 0.0
        %v504 = vand.u32 %v308, 4294901760
        %v505 = vsub.f32 %v308, %v504
        %v506 = vand.u32 %v505, 4294901760
        %v507 = vsub.f32 %v505, %v506
        %v508 = vand.u32 %v507, 4294901760
        %509 = vmatpush1.msra.mxu0 %v508
        %510 = vmatprep.subr.mxu0 0.0
        %v511 = vand.u32 %v307, 4294901760
        %v512 = vsub.f32 %v307, %v511
        %v513 = vand.u32 %v512, 4294901760
        %v514 = vsub.f32 %v512, %v513
        %v515 = vand.u32 %v514, 4294901760
        %516 = vmatpush1.msra.mxu0 %v515
        %517 = vmatprep.subr.mxu0 0.0
        %v518 = vand.u32 %v306, 4294901760
        %v519 = vsub.f32 %v306, %v518
        %v520 = vand.u32 %v519, 4294901760
        %v521 = vsub.f32 %v519, %v520
        %v522 = vand.u32 %v521, 4294901760
        %523 = vmatpush1.msra.mxu0 %v522
        %524 = vmatprep.subr.mxu0 0.0
        %v525 = vand.u32 %v305, 4294901760
        %v526 = vsub.f32 %v305, %v525
        %v527 = vand.u32 %v526, 4294901760
        %v528 = vsub.f32 %v526, %v527
        %v529 = vand.u32 %v528, 4294901760
        %530 = vmatpush1.msra.mxu0 %v529
        %531 = vmatprep.subr.mxu0 0.0
        %532 = vmatpush2.msra.mxu0 0.0
        %533 = vmatprep.subr.mxu0 0.0
        %534 = vmatpush2.msra.mxu0 0.0
        %535 = vmatprep.subr.mxu0 0.0
        %536 = vmatpush2.msra.mxu0 0.0
        %537 = vmatprep.subr.mxu0 0.0
        %538 = vmatpush2.msra.mxu0 0.0
        %539 = vmatprep.subr.mxu0 0.0
        %540 = vmatpush2.msra.mxu0 0.0
        %541 = vmatprep.subr.mxu0 0.0
        %542 = vmatpush2.msra.mxu0 0.0
        %543 = vmatprep.subr.mxu0 0.0
        %544 = vmatpush2.msra.mxu0 0.0
        %545 = vmatprep.subr.mxu0 0.0
        %546 = vmatpush2.msra.mxu0 0.0
        %547 = vmatprep.subr.mxu0 0.0
        %548 = vmatpush2.msra.mxu0 0.0
        %549 = vmatprep.subr.mxu0 0.0
        %550 = vmatpush2.msra.mxu0 0.0
        %551 = vmatprep.subr.mxu0 0.0
        %552 = vmatpush2.msra.mxu0 0.0
        %553 = vmatprep.subr.mxu0 0.0
        %554 = vmatpush2.msra.mxu0 0.0
        %555 = vmatprep.subr.mxu0 0.0
        %556 = vmatpush2.msra.mxu0 0.0
        %557 = vmatprep.subr.mxu0 0.0
        %558 = vmatpush2.msra.mxu0 0.0
        %559 = vmatprep.subr.mxu0 0.0
        %560 = vmatpush2.msra.mxu0 0.0
        %561 = vmatprep.subr.mxu0 0.0
        %562 = vmatpush2.msra.mxu0 0.0
        %563 = vmatprep.mubr.f32.mxu0 0.0
        %v564 = vand.u32 %v304, 4294901760
        %565 = vmatmul.mubr.f32.gmra.mxu0 %v564
        %v566 = vpop.f32.mrf.mxu0
        %v567 = vadd.f32 %v416, %v566
        %v568 = vpop.f32.mrf.mxu0
        %569 = vdwg.mxu0
        %570 = vmatprep.subr.mxu0 0.0
        %v571 = vand.u32 %v320, 4294901760
        %v572 = vsub.f32 %v320, %v571
        %573 = vmatpush1.msra.mxu0 %v572
        %574 = vmatprep.subr.mxu0 0.0
        %v575 = vand.u32 %v319, 4294901760
        %v576 = vsub.f32 %v319, %v575
        %577 = vmatpush1.msra.mxu0 %v576
        %578 = vmatprep.subr.mxu0 0.0
        %v579 = vand.u32 %v318, 4294901760
        %v580 = vsub.f32 %v318, %v579
        %581 = vmatpush1.msra.mxu0 %v580
        %582 = vmatprep.subr.mxu0 0.0
        %v583 = vand.u32 %v317, 4294901760
        %v584 = vsub.f32 %v317, %v583
        %585 = vmatpush1.msra.mxu0 %v584
        %586 = vmatprep.subr.mxu0 0.0
        %v587 = vand.u32 %v316, 4294901760
        %v588 = vsub.f32 %v316, %v587
        %589 = vmatpush1.msra.mxu0 %v588
        %590 = vmatprep.subr.mxu0 0.0
        %v591 = vand.u32 %v315, 4294901760
        %v592 = vsub.f32 %v315, %v591
        %593 = vmatpush1.msra.mxu0 %v592
        %594 = vmatprep.subr.mxu0 0.0
        %v595 = vand.u32 %v314, 4294901760
        %v596 = vsub.f32 %v314, %v595
        %597 = vmatpush1.msra.mxu0 %v596
        %598 = vmatprep.subr.mxu0 0.0
        %v599 = vand.u32 %v313, 4294901760
        %v600 = vsub.f32 %v313, %v599
        %601 = vmatpush1.msra.mxu0 %v600
        %602 = vmatprep.subr.mxu0 0.0
        %v603 = vand.u32 %v312, 4294901760
        %v604 = vsub.f32 %v312, %v603
        %605 = vmatpush1.msra.mxu0 %v604
        %606 = vmatprep.subr.mxu0 0.0
        %v607 = vand.u32 %v311, 4294901760
        %v608 = vsub.f32 %v311, %v607
        %609 = vmatpush1.msra.mxu0 %v608
        %610 = vmatprep.subr.mxu0 0.0
        %v611 = vand.u32 %v310, 4294901760
        %v612 = vsub.f32 %v310, %v611
        %613 = vmatpush1.msra.mxu0 %v612
        %614 = vmatprep.subr.mxu0 0.0
        %v615 = vand.u32 %v309, 4294901760
        %v616 = vsub.f32 %v309, %v615
        %617 = vmatpush1.msra.mxu0 %v616
        %618 = vmatprep.subr.mxu0 0.0
        %v619 = vand.u32 %v308, 4294901760
        %v620 = vsub.f32 %v308, %v619
        %621 = vmatpush1.msra.mxu0 %v620
        %622 = vmatprep.subr.mxu0 0.0
        %v623 = vand.u32 %v307, 4294901760
        %v624 = vsub.f32 %v307, %v623
        %625 = vmatpush1.msra.mxu0 %v624
        %626 = vmatprep.subr.mxu0 0.0
        %v627 = vand.u32 %v306, 4294901760
        %v628 = vsub.f32 %v306, %v627
        %629 = vmatpush1.msra.mxu0 %v628
        %630 = vmatprep.subr.mxu0 0.0
        %v631 = vand.u32 %v305, 4294901760
        %v632 = vsub.f32 %v305, %v631
        %633 = vmatpush1.msra.mxu0 %v632
        %634 = vmatprep.subr.mxu0 0.0
        %635 = vmatpush2.msra.mxu0 0.0
        %636 = vmatprep.subr.mxu0 0.0
        %637 = vmatpush2.msra.mxu0 0.0
        %638 = vmatprep.subr.mxu0 0.0
        %639 = vmatpush2.msra.mxu0 0.0
        %640 = vmatprep.subr.mxu0 0.0
        %641 = vmatpush2.msra.mxu0 0.0
        %642 = vmatprep.subr.mxu0 0.0
        %643 = vmatpush2.msra.mxu0 0.0
        %644 = vmatprep.subr.mxu0 0.0
        %645 = vmatpush2.msra.mxu0 0.0
        %646 = vmatprep.subr.mxu0 0.0
        %647 = vmatpush2.msra.mxu0 0.0
        %648 = vmatprep.subr.mxu0 0.0
        %649 = vmatpush2.msra.mxu0 0.0
        %650 = vmatprep.subr.mxu0 0.0
        %651 = vmatpush2.msra.mxu0 0.0
        %652 = vmatprep.subr.mxu0 0.0
        %653 = vmatpush2.msra.mxu0 0.0
        %654 = vmatprep.subr.mxu0 0.0
        %655 = vmatpush2.msra.mxu0 0.0
        %656 = vmatprep.subr.mxu0 0.0
        %657 = vmatpush2.msra.mxu0 0.0
        %658 = vmatprep.subr.mxu0 0.0
        %659 = vmatpush2.msra.mxu0 0.0
        %660 = vmatprep.subr.mxu0 0.0
        %661 = vmatpush2.msra.mxu0 0.0
        %662 = vmatprep.subr.mxu0 0.0
        %663 = vmatpush2.msra.mxu0 0.0
        %664 = vmatprep.subr.mxu0 0.0
        %665 = vmatpush2.msra.mxu0 0.0
        %666 = vmatprep.mubr.f32.mxu0 0.0
        %v667 = vand.u32 %v304, 4294901760
        %v668 = vsub.f32 %v304, %v667
        %669 = vmatmul.mubr.f32.gmra.mxu0 %v668
        %v670 = vpop.f32.mrf.mxu0
        %v671 = vadd.f32 %v567, %v670
        %v672 = vpop.f32.mrf.mxu0
        %673 = vdwg.mxu0
        %674 = vmatprep.subr.mxu0 0.0
        %v675 = vand.u32 %v320, 4294901760
        %676 = vmatpush1.msra.mxu0 %v675
        %677 = vmatprep.subr.mxu0 0.0
        %v678 = vand.u32 %v319, 4294901760
        %679 = vmatpush1.msra.mxu0 %v678
        %680 = vmatprep.subr.mxu0 0.0
        %v681 = vand.u32 %v318, 4294901760
        %682 = vmatpush1.msra.mxu0 %v681
        %683 = vmatprep.subr.mxu0 0.0
        %v684 = vand.u32 %v317, 4294901760
        %685 = vmatpush1.msra.mxu0 %v684
        %686 = vmatprep.subr.mxu0 0.0
        %v687 = vand.u32 %v316, 4294901760
        %688 = vmatpush1.msra.mxu0 %v687
        %689 = vmatprep.subr.mxu0 0.0
        %v690 = vand.u32 %v315, 4294901760
        %691 = vmatpush1.msra.mxu0 %v690
        %692 = vmatprep.subr.mxu0 0.0
        %v693 = vand.u32 %v314, 4294901760
        %694 = vmatpush1.msra.mxu0 %v693
        %695 = vmatprep.subr.mxu0 0.0
        %v696 = vand.u32 %v313, 4294901760
        %697 = vmatpush1.msra.mxu0 %v696
        %698 = vmatprep.subr.mxu0 0.0
        %v699 = vand.u32 %v312, 4294901760
        %700 = vmatpush1.msra.mxu0 %v699
        %701 = vmatprep.subr.mxu0 0.0
        %v702 = vand.u32 %v311, 4294901760
        %703 = vmatpush1.msra.mxu0 %v702
        %704 = vmatprep.subr.mxu0 0.0
        %v705 = vand.u32 %v310, 4294901760
        %706 = vmatpush1.msra.mxu0 %v705
        %707 = vmatprep.subr.mxu0 0.0
        %v708 = vand.u32 %v309, 4294901760
        %709 = vmatpush1.msra.mxu0 %v708
        %710 = vmatprep.subr.mxu0 0.0
        %v711 = vand.u32 %v308, 4294901760
        %712 = vmatpush1.msra.mxu0 %v711
        %713 = vmatprep.subr.mxu0 0.0
        %v714 = vand.u32 %v307, 4294901760
        %715 = vmatpush1.msra.mxu0 %v714
        %716 = vmatprep.subr.mxu0 0.0
        %v717 = vand.u32 %v306, 4294901760
        %718 = vmatpush1.msra.mxu0 %v717
        %719 = vmatprep.subr.mxu0 0.0
        %v720 = vand.u32 %v305, 4294901760
        %721 = vmatpush1.msra.mxu0 %v720
        %722 = vmatprep.subr.mxu0 0.0
        %723 = vmatpush2.msra.mxu0 0.0
        %724 = vmatprep.subr.mxu0 0.0
        %725 = vmatpush2.msra.mxu0 0.0
        %726 = vmatprep.subr.mxu0 0.0
        %727 = vmatpush2.msra.mxu0 0.0
        %728 = vmatprep.subr.mxu0 0.0
        %729 = vmatpush2.msra.mxu0 0.0
        %730 = vmatprep.subr.mxu0 0.0
        %731 = vmatpush2.msra.mxu0 0.0
        %732 = vmatprep.subr.mxu0 0.0
        %733 = vmatpush2.msra.mxu0 0.0
        %734 = vmatprep.subr.mxu0 0.0
        %735 = vmatpush2.msra.mxu0 0.0
        %736 = vmatprep.subr.mxu0 0.0
        %737 = vmatpush2.msra.mxu0 0.0
        %738 = vmatprep.subr.mxu0 0.0
        %739 = vmatpush2.msra.mxu0 0.0
        %740 = vmatprep.subr.mxu0 0.0
        %741 = vmatpush2.msra.mxu0 0.0
        %742 = vmatprep.subr.mxu0 0.0
        %743 = vmatpush2.msra.mxu0 0.0
        %744 = vmatprep.subr.mxu0 0.0
        %745 = vmatpush2.msra.mxu0 0.0
        %746 = vmatprep.subr.mxu0 0.0
        %747 = vmatpush2.msra.mxu0 0.0
        %748 = vmatprep.subr.mxu0 0.0
        %749 = vmatpush2.msra.mxu0 0.0
        %750 = vmatprep.subr.mxu0 0.0
        %751 = vmatpush2.msra.mxu0 0.0
        %752 = vmatprep.subr.mxu0 0.0
        %753 = vmatpush2.msra.mxu0 0.0
        %754 = vmatprep.mubr.f32.mxu0 0.0
        %v755 = vand.u32 %v304, 4294901760
        %v756 = vsub.f32 %v304, %v755
        %v757 = vand.u32 %v756, 4294901760
        %758 = vmatmul.mubr.f32.gmra.mxu0 %v757
        %v759 = vpop.f32.mrf.mxu0
        %v760 = vadd.f32 %v671, %v759
        %v761 = vpop.f32.mrf.mxu0
        %762 = vdwg.mxu0
        %763 = vmatprep.subr.mxu0 0.0
        %v764 = vand.u32 %v320, 4294901760
        %v765 = vsub.f32 %v320, %v764
        %v766 = vand.u32 %v765, 4294901760
        %767 = vmatpush1.msra.mxu0 %v766
        %768 = vmatprep.subr.mxu0 0.0
        %v769 = vand.u32 %v319, 4294901760
        %v770 = vsub.f32 %v319, %v769
        %v771 = vand.u32 %v770, 4294901760
        %772 = vmatpush1.msra.mxu0 %v771
        %773 = vmatprep.subr.mxu0 0.0
        %v774 = vand.u32 %v318, 4294901760
        %v775 = vsub.f32 %v318, %v774
        %v776 = vand.u32 %v775, 4294901760
        %777 = vmatpush1.msra.mxu0 %v776
        %778 = vmatprep.subr.mxu0 0.0
        %v779 = vand.u32 %v317, 4294901760
        %v780 = vsub.f32 %v317, %v779
        %v781 = vand.u32 %v780, 4294901760
        %782 = vmatpush1.msra.mxu0 %v781
        %783 = vmatprep.subr.mxu0 0.0
        %v784 = vand.u32 %v316, 4294901760
        %v785 = vsub.f32 %v316, %v784
        %v786 = vand.u32 %v785, 4294901760
        %787 = vmatpush1.msra.mxu0 %v786
        %788 = vmatprep.subr.mxu0 0.0
        %v789 = vand.u32 %v315, 4294901760
        %v790 = vsub.f32 %v315, %v789
        %v791 = vand.u32 %v790, 4294901760
        %792 = vmatpush1.msra.mxu0 %v791
        %793 = vmatprep.subr.mxu0 0.0
        %v794 = vand.u32 %v314, 4294901760
        %v795 = vsub.f32 %v314, %v794
        %v796 = vand.u32 %v795, 4294901760
        %797 = vmatpush1.msra.mxu0 %v796
        %798 = vmatprep.subr.mxu0 0.0
        %v799 = vand.u32 %v313, 4294901760
        %v800 = vsub.f32 %v313, %v799
        %v801 = vand.u32 %v800, 4294901760
        %802 = vmatpush1.msra.mxu0 %v801
        %803 = vmatprep.subr.mxu0 0.0
        %v804 = vand.u32 %v312, 4294901760
        %v805 = vsub.f32 %v312, %v804
        %v806 = vand.u32 %v805, 4294901760
        %807 = vmatpush1.msra.mxu0 %v806
        %808 = vmatprep.subr.mxu0 0.0
        %v809 = vand.u32 %v311, 4294901760
        %v810 = vsub.f32 %v311, %v809
        %v811 = vand.u32 %v810, 4294901760
        %812 = vmatpush1.msra.mxu0 %v811
        %813 = vmatprep.subr.mxu0 0.0
        %v814 = vand.u32 %v310, 4294901760
        %v815 = vsub.f32 %v310, %v814
        %v816 = vand.u32 %v815, 4294901760
        %817 = vmatpush1.msra.mxu0 %v816
        %818 = vmatprep.subr.mxu0 0.0
        %v819 = vand.u32 %v309, 4294901760
        %v820 = vsub.f32 %v309, %v819
        %v821 = vand.u32 %v820, 4294901760
        %822 = vmatpush1.msra.mxu0 %v821
        %823 = vmatprep.subr.mxu0 0.0
        %v824 = vand.u32 %v308, 4294901760
        %v825 = vsub.f32 %v308, %v824
        %v826 = vand.u32 %v825, 4294901760
        %827 = vmatpush1.msra.mxu0 %v826
        %828 = vmatprep.subr.mxu0 0.0
        %v829 = vand.u32 %v307, 4294901760
        %v830 = vsub.f32 %v307, %v829
        %v831 = vand.u32 %v830, 4294901760
        %832 = vmatpush1.msra.mxu0 %v831
        %833 = vmatprep.subr.mxu0 0.0
        %v834 = vand.u32 %v306, 4294901760
        %v835 = vsub.f32 %v306, %v834
        %v836 = vand.u32 %v835, 4294901760
        %837 = vmatpush1.msra.mxu0 %v836
        %838 = vmatprep.subr.mxu0 0.0
        %v839 = vand.u32 %v305, 4294901760
        %v840 = vsub.f32 %v305, %v839
        %v841 = vand.u32 %v840, 4294901760
        %842 = vmatpush1.msra.mxu0 %v841
        %843 = vmatprep.subr.mxu0 0.0
        %844 = vmatpush2.msra.mxu0 0.0
        %845 = vmatprep.subr.mxu0 0.0
        %846 = vmatpush2.msra.mxu0 0.0
        %847 = vmatprep.subr.mxu0 0.0
        %848 = vmatpush2.msra.mxu0 0.0
        %849 = vmatprep.subr.mxu0 0.0
        %850 = vmatpush2.msra.mxu0 0.0
        %851 = vmatprep.subr.mxu0 0.0
        %852 = vmatpush2.msra.mxu0 0.0
        %853 = vmatprep.subr.mxu0 0.0
        %854 = vmatpush2.msra.mxu0 0.0
        %855 = vmatprep.subr.mxu0 0.0
        %856 = vmatpush2.msra.mxu0 0.0
        %857 = vmatprep.subr.mxu0 0.0
        %858 = vmatpush2.msra.mxu0 0.0
        %859 = vmatprep.subr.mxu0 0.0
        %860 = vmatpush2.msra.mxu0 0.0
        %861 = vmatprep.subr.mxu0 0.0
        %862 = vmatpush2.msra.mxu0 0.0
        %863 = vmatprep.subr.mxu0 0.0
        %864 = vmatpush2.msra.mxu0 0.0
        %865 = vmatprep.subr.mxu0 0.0
        %866 = vmatpush2.msra.mxu0 0.0
        %867 = vmatprep.subr.mxu0 0.0
        %868 = vmatpush2.msra.mxu0 0.0
        %869 = vmatprep.subr.mxu0 0.0
        %870 = vmatpush2.msra.mxu0 0.0
        %871 = vmatprep.subr.mxu0 0.0
        %872 = vmatpush2.msra.mxu0 0.0
        %873 = vmatprep.subr.mxu0 0.0
        %874 = vmatpush2.msra.mxu0 0.0
        %875 = vmatprep.mubr.f32.mxu0 0.0
        %v876 = vand.u32 %v304, 4294901760
        %877 = vmatmul.mubr.f32.gmra.mxu0 %v876
        %v878 = vpop.f32.mrf.mxu0
        %v879 = vadd.f32 %v760, %v878
        %v880 = vpop.f32.mrf.mxu0
        %881 = vdwg.mxu0
        %882 = vmatprep.subr.mxu0 0.0
        %v883 = vand.u32 %v320, 4294901760
        %884 = vmatpush1.msra.mxu0 %v883
        %885 = vmatprep.subr.mxu0 0.0
        %v886 = vand.u32 %v319, 4294901760
        %887 = vmatpush1.msra.mxu0 %v886
        %888 = vmatprep.subr.mxu0 0.0
        %v889 = vand.u32 %v318, 4294901760
        %890 = vmatpush1.msra.mxu0 %v889
        %891 = vmatprep.subr.mxu0 0.0
        %v892 = vand.u32 %v317, 4294901760
        %893 = vmatpush1.msra.mxu0 %v892
        %894 = vmatprep.subr.mxu0 0.0
        %v895 = vand.u32 %v316, 4294901760
        %896 = vmatpush1.msra.mxu0 %v895
        %897 = vmatprep.subr.mxu0 0.0
        %v898 = vand.u32 %v315, 4294901760
        %899 = vmatpush1.msra.mxu0 %v898
        %900 = vmatprep.subr.mxu0 0.0
        %v901 = vand.u32 %v314, 4294901760
        %902 = vmatpush1.msra.mxu0 %v901
        %903 = vmatprep.subr.mxu0 0.0
        %v904 = vand.u32 %v313, 4294901760
        %905 = vmatpush1.msra.mxu0 %v904
        %906 = vmatprep.subr.mxu0 0.0
        %v907 = vand.u32 %v312, 4294901760
        %908 = vmatpush1.msra.mxu0 %v907
        %909 = vmatprep.subr.mxu0 0.0
        %v910 = vand.u32 %v311, 4294901760
        %911 = vmatpush1.msra.mxu0 %v910
        %912 = vmatprep.subr.mxu0 0.0
        %v913 = vand.u32 %v310, 4294901760
        %914 = vmatpush1.msra.mxu0 %v913
        %915 = vmatprep.subr.mxu0 0.0
        %v916 = vand.u32 %v309, 4294901760
        %917 = vmatpush1.msra.mxu0 %v916
        %918 = vmatprep.subr.mxu0 0.0
        %v919 = vand.u32 %v308, 4294901760
        %920 = vmatpush1.msra.mxu0 %v919
        %921 = vmatprep.subr.mxu0 0.0
        %v922 = vand.u32 %v307, 4294901760
        %923 = vmatpush1.msra.mxu0 %v922
        %924 = vmatprep.subr.mxu0 0.0
        %v925 = vand.u32 %v306, 4294901760
        %926 = vmatpush1.msra.mxu0 %v925
        %927 = vmatprep.subr.mxu0 0.0
        %v928 = vand.u32 %v305, 4294901760
        %929 = vmatpush1.msra.mxu0 %v928
        %930 = vmatprep.subr.mxu0 0.0
        %931 = vmatpush2.msra.mxu0 0.0
        %932 = vmatprep.subr.mxu0 0.0
        %933 = vmatpush2.msra.mxu0 0.0
        %934 = vmatprep.subr.mxu0 0.0
        %935 = vmatpush2.msra.mxu0 0.0
        %936 = vmatprep.subr.mxu0 0.0
        %937 = vmatpush2.msra.mxu0 0.0
        %938 = vmatprep.subr.mxu0 0.0
        %939 = vmatpush2.msra.mxu0 0.0
        %940 = vmatprep.subr.mxu0 0.0
        %941 = vmatpush2.msra.mxu0 0.0
        %942 = vmatprep.subr.mxu0 0.0
        %943 = vmatpush2.msra.mxu0 0.0
        %944 = vmatprep.subr.mxu0 0.0
        %945 = vmatpush2.msra.mxu0 0.0
        %946 = vmatprep.subr.mxu0 0.0
        %947 = vmatpush2.msra.mxu0 0.0
        %948 = vmatprep.subr.mxu0 0.0
        %949 = vmatpush2.msra.mxu0 0.0
        %950 = vmatprep.subr.mxu0 0.0
        %951 = vmatpush2.msra.mxu0 0.0
        %952 = vmatprep.subr.mxu0 0.0
        %953 = vmatpush2.msra.mxu0 0.0
        %954 = vmatprep.subr.mxu0 0.0
        %955 = vmatpush2.msra.mxu0 0.0
        %956 = vmatprep.subr.mxu0 0.0
        %957 = vmatpush2.msra.mxu0 0.0
        %958 = vmatprep.subr.mxu0 0.0
        %959 = vmatpush2.msra.mxu0 0.0
        %960 = vmatprep.subr.mxu0 0.0
        %961 = vmatpush2.msra.mxu0 0.0
        %962 = vmatprep.mubr.f32.mxu0 0.0
        %v963 = vand.u32 %v304, 4294901760
        %964 = vmatmul.mubr.f32.gmra.mxu0 %v963
        %v965 = vpop.f32.mrf.mxu0
        %v966 = vadd.f32 %v879, %v965
        %v967 = vpop.f32.mrf.mxu0
        %968 = vdwg.mxu0
        %v969 = vmax.f32 %v966, 0.0
        %v970 = vld [vmem:[#allocation7] sm:$0xff]
        %v971 = vld [vmem:[#allocation7 + $0x8] sm:$0xff]
        %v972 = vld [vmem:[#allocation7 + $0x10] sm:$0xff]
        %v973 = vld [vmem:[#allocation7 + $0x18] sm:$0xff]
        %v974 = vld [vmem:[#allocation7 + $0x20] sm:$0xff]
        %v975 = vld [vmem:[#allocation7 + $0x28] sm:$0xff]
        %v976 = vld [vmem:[#allocation7 + $0x30] sm:$0xff]
        %v977 = vld [vmem:[#allocation7 + $0x38] sm:$0xff]
        %v978 = vld [vmem:[#allocation7 + $0x40] sm:$0xff]
        %v979 = vld [vmem:[#allocation7 + $0x48] sm:$0xff]
        %v980 = vld [vmem:[#allocation7 + $0x50] sm:$0xff]
        %v981 = vld [vmem:[#allocation7 + $0x58] sm:$0xff]
        %v982 = vld [vmem:[#allocation7 + $0x60] sm:$0xff]
        %v983 = vld [vmem:[#allocation7 + $0x68] sm:$0xff]
        %v984 = vld [vmem:[#allocation7 + $0x70] sm:$0xff]
        %v985 = vld [vmem:[#allocation7 + $0x78] sm:$0xff]
        %v986 = vld [vmem:[%s303] sm:$0x1]
        %v988 = vlaneseq
        %v989 = vshrl.u32 %v988, 7
        %v990 = vsub.s32 0, %v989
        %v991 = vrot.slane %v986, %v990
        %993 = vmatprep.subr.mxu0 0.0
        %v994 = vand.u32 %v985, 4294901760
        %995 = vmatpush1.msra.mxu0 %v994
        %996 = vmatprep.subr.mxu0 0.0
        %v997 = vand.u32 %v984, 4294901760
        %998 = vmatpush1.msra.mxu0 %v997
        %999 = vmatprep.subr.mxu0 0.0
        %v1000 = vand.u32 %v983, 4294901760
        %1001 = vmatpush1.msra.mxu0 %v1000
        %1002 = vmatprep.subr.mxu0 0.0
        %v1003 = vand.u32 %v982, 4294901760
        %1004 = vmatpush1.msra.mxu0 %v1003
        %1005 = vmatprep.subr.mxu0 0.0
        %v1006 = vand.u32 %v981, 4294901760
        %1007 = vmatpush1.msra.mxu0 %v1006
        %1008 = vmatprep.subr.mxu0 0.0
        %v1009 = vand.u32 %v980, 4294901760
        %1010 = vmatpush1.msra.mxu0 %v1009
        %1011 = vmatprep.subr.mxu0 0.0
        %v1012 = vand.u32 %v979, 4294901760
        %1013 = vmatpush1.msra.mxu0 %v1012
        %1014 = vmatprep.subr.mxu0 0.0
        %v1015 = vand.u32 %v978, 4294901760
        %1016 = vmatpush1.msra.mxu0 %v1015
        %1017 = vmatprep.subr.mxu0 0.0
        %v1018 = vand.u32 %v977, 4294901760
        %1019 = vmatpush1.msra.mxu0 %v1018
        %1020 = vmatprep.subr.mxu0 0.0
        %v1021 = vand.u32 %v976, 4294901760
        %1022 = vmatpush1.msra.mxu0 %v1021
        %1023 = vmatprep.subr.mxu0 0.0
        %v1024 = vand.u32 %v975, 4294901760
        %1025 = vmatpush1.msra.mxu0 %v1024
        %1026 = vmatprep.subr.mxu0 0.0
        %v1027 = vand.u32 %v974, 4294901760
        %1028 = vmatpush1.msra.mxu0 %v1027
        %1029 = vmatprep.subr.mxu0 0.0
        %v1030 = vand.u32 %v973, 4294901760
        %1031 = vmatpush1.msra.mxu0 %v1030
        %1032 = vmatprep.subr.mxu0 0.0
        %v1033 = vand.u32 %v972, 4294901760
        %1034 = vmatpush1.msra.mxu0 %v1033
        %1035 = vmatprep.subr.mxu0 0.0
        %v1036 = vand.u32 %v971, 4294901760
        %1037 = vmatpush1.msra.mxu0 %v1036
        %1038 = vmatprep.subr.mxu0 0.0
        %v1039 = vand.u32 %v970, 4294901760
        %1040 = vmatpush1.msra.mxu0 %v1039
        %1041 = vmatprep.subr.mxu0 0.0
        %1042 = vmatpush2.msra.mxu0 0.0
        %1043 = vmatprep.subr.mxu0 0.0
        %1044 = vmatpush2.msra.mxu0 0.0
        %1045 = vmatprep.subr.mxu0 0.0
        %1046 = vmatpush2.msra.mxu0 0.0
        %1047 = vmatprep.subr.mxu0 0.0
        %1048 = vmatpush2.msra.mxu0 0.0
        %1049 = vmatprep.subr.mxu0 0.0
        %1050 = vmatpush2.msra.mxu0 0.0
        %1051 = vmatprep.subr.mxu0 0.0
        %1052 = vmatpush2.msra.mxu0 0.0
        %1053 = vmatprep.subr.mxu0 0.0
        %1054 = vmatpush2.msra.mxu0 0.0
        %1055 = vmatprep.subr.mxu0 0.0
        %1056 = vmatpush2.msra.mxu0 0.0
        %1057 = vmatprep.subr.mxu0 0.0
        %1058 = vmatpush2.msra.mxu0 0.0
        %1059 = vmatprep.subr.mxu0 0.0
        %1060 = vmatpush2.msra.mxu0 0.0
        %1061 = vmatprep.subr.mxu0 0.0
        %1062 = vmatpush2.msra.mxu0 0.0
        %1063 = vmatprep.subr.mxu0 0.0
        %1064 = vmatpush2.msra.mxu0 0.0
        %1065 = vmatprep.subr.mxu0 0.0
        %1066 = vmatpush2.msra.mxu0 0.0
        %1067 = vmatprep.subr.mxu0 0.0
        %1068 = vmatpush2.msra.mxu0 0.0
        %1069 = vmatprep.subr.mxu0 0.0
        %1070 = vmatpush2.msra.mxu0 0.0
        %1071 = vmatprep.subr.mxu0 0.0
        %1072 = vmatpush2.msra.mxu0 0.0
        %1073 = vmatprep.mubr.f32.mxu0 0.0
        %v1074 = vand.u32 %v969, 4294901760
        %v1075 = vsub.f32 %v969, %v1074
        %v1076 = vand.u32 %v1075, 4294901760
        %v1077 = vsub.f32 %v1075, %v1076
        %v1078 = vand.u32 %v1077, 4294901760
        %1079 = vmatmul.mubr.f32.gmra.mxu0 %v1078
        %v1080 = vpop.f32.mrf.mxu0
        %v1081 = vadd.f32 %v991, %v1080
        %v1082 = vpop.f32.mrf.mxu0
        %1083 = vdwg.mxu0
        %1084 = vmatprep.subr.mxu0 0.0
        %v1085 = vand.u32 %v985, 4294901760
        %v1086 = vsub.f32 %v985, %v1085
        %v1087 = vand.u32 %v1086, 4294901760
        %v1088 = vsub.f32 %v1086, %v1087
        %v1089 = vand.u32 %v1088, 4294901760
        %1090 = vmatpush1.msra.mxu0 %v1089
        %1091 = vmatprep.subr.mxu0 0.0
        %v1092 = vand.u32 %v984, 4294901760
        %v1093 = vsub.f32 %v984, %v1092
        %v1094 = vand.u32 %v1093, 4294901760
        %v1095 = vsub.f32 %v1093, %v1094
        %v1096 = vand.u32 %v1095, 4294901760
        %1097 = vmatpush1.msra.mxu0 %v1096
        %1098 = vmatprep.subr.mxu0 0.0
        %v1099 = vand.u32 %v983, 4294901760
        %v1100 = vsub.f32 %v983, %v1099
        %v1101 = vand.u32 %v1100, 4294901760
        %v1102 = vsub.f32 %v1100, %v1101
        %v1103 = vand.u32 %v1102, 4294901760
        %1104 = vmatpush1.msra.mxu0 %v1103
        %1105 = vmatprep.subr.mxu0 0.0
        %v1106 = vand.u32 %v982, 4294901760
        %v1107 = vsub.f32 %v982, %v1106
        %v1108 = vand.u32 %v1107, 4294901760
        %v1109 = vsub.f32 %v1107, %v1108
        %v1110 = vand.u32 %v1109, 4294901760
        %1111 = vmatpush1.msra.mxu0 %v1110
        %1112 = vmatprep.subr.mxu0 0.0
        %v1113 = vand.u32 %v981, 4294901760
        %v1114 = vsub.f32 %v981, %v1113
        %v1115 = vand.u32 %v1114, 4294901760
        %v1116 = vsub.f32 %v1114, %v1115
        %v1117 = vand.u32 %v1116, 4294901760
        %1118 = vmatpush1.msra.mxu0 %v1117
        %1119 = vmatprep.subr.mxu0 0.0
        %v1120 = vand.u32 %v980, 4294901760
        %v1121 = vsub.f32 %v980, %v1120
        %v1122 = vand.u32 %v1121, 4294901760
        %v1123 = vsub.f32 %v1121, %v1122
        %v1124 = vand.u32 %v1123, 4294901760
        %1125 = vmatpush1.msra.mxu0 %v1124
        %1126 = vmatprep.subr.mxu0 0.0
        %v1127 = vand.u32 %v979, 4294901760
        %v1128 = vsub.f32 %v979, %v1127
        %v1129 = vand.u32 %v1128, 4294901760
        %v1130 = vsub.f32 %v1128, %v1129
        %v1131 = vand.u32 %v1130, 4294901760
        %1132 = vmatpush1.msra.mxu0 %v1131
        %1133 = vmatprep.subr.mxu0 0.0
        %v1134 = vand.u32 %v978, 4294901760
        %v1135 = vsub.f32 %v978, %v1134
        %v1136 = vand.u32 %v1135, 4294901760
        %v1137 = vsub.f32 %v1135, %v1136
        %v1138 = vand.u32 %v1137, 4294901760
        %1139 = vmatpush1.msra.mxu0 %v1138
        %1140 = vmatprep.subr.mxu0 0.0
        %v1141 = vand.u32 %v977, 4294901760
        %v1142 = vsub.f32 %v977, %v1141
        %v1143 = vand.u32 %v1142, 4294901760
        %v1144 = vsub.f32 %v1142, %v1143
        %v1145 = vand.u32 %v1144, 4294901760
        %1146 = vmatpush1.msra.mxu0 %v1145
        %1147 = vmatprep.subr.mxu0 0.0
        %v1148 = vand.u32 %v976, 4294901760
        %v1149 = vsub.f32 %v976, %v1148
        %v1150 = vand.u32 %v1149, 4294901760
        %v1151 = vsub.f32 %v1149, %v1150
        %v1152 = vand.u32 %v1151, 4294901760
        %1153 = vmatpush1.msra.mxu0 %v1152
        %1154 = vmatprep.subr.mxu0 0.0
        %v1155 = vand.u32 %v975, 4294901760
        %v1156 = vsub.f32 %v975, %v1155
        %v1157 = vand.u32 %v1156, 4294901760
        %v1158 = vsub.f32 %v1156, %v1157
        %v1159 = vand.u32 %v1158, 4294901760
        %1160 = vmatpush1.msra.mxu0 %v1159
        %1161 = vmatprep.subr.mxu0 0.0
        %v1162 = vand.u32 %v974, 4294901760
        %v1163 = vsub.f32 %v974, %v1162
        %v1164 = vand.u32 %v1163, 4294901760
        %v1165 = vsub.f32 %v1163, %v1164
        %v1166 = vand.u32 %v1165, 4294901760
        %1167 = vmatpush1.msra.mxu0 %v1166
        %1168 = vmatprep.subr.mxu0 0.0
        %v1169 = vand.u32 %v973, 4294901760
        %v1170 = vsub.f32 %v973, %v1169
        %v1171 = vand.u32 %v1170, 4294901760
        %v1172 = vsub.f32 %v1170, %v1171
        %v1173 = vand.u32 %v1172, 4294901760
        %1174 = vmatpush1.msra.mxu0 %v1173
        %1175 = vmatprep.subr.mxu0 0.0
        %v1176 = vand.u32 %v972, 4294901760
        %v1177 = vsub.f32 %v972, %v1176
        %v1178 = vand.u32 %v1177, 4294901760
        %v1179 = vsub.f32 %v1177, %v1178
        %v1180 = vand.u32 %v1179, 4294901760
        %1181 = vmatpush1.msra.mxu0 %v1180
        %1182 = vmatprep.subr.mxu0 0.0
        %v1183 = vand.u32 %v971, 4294901760
        %v1184 = vsub.f32 %v971, %v1183
        %v1185 = vand.u32 %v1184, 4294901760
        %v1186 = vsub.f32 %v1184, %v1185
        %v1187 = vand.u32 %v1186, 4294901760
        %1188 = vmatpush1.msra.mxu0 %v1187
        %1189 = vmatprep.subr.mxu0 0.0
        %v1190 = vand.u32 %v970, 4294901760
        %v1191 = vsub.f32 %v970, %v1190
        %v1192 = vand.u32 %v1191, 4294901760
        %v1193 = vsub.f32 %v1191, %v1192
        %v1194 = vand.u32 %v1193, 4294901760
        %1195 = vmatpush1.msra.mxu0 %v1194
        %1196 = vmatprep.subr.mxu0 0.0
        %1197 = vmatpush2.msra.mxu0 0.0
        %1198 = vmatprep.subr.mxu0 0.0
        %1199 = vmatpush2.msra.mxu0 0.0
        %1200 = vmatprep.subr.mxu0 0.0
        %1201 = vmatpush2.msra.mxu0 0.0
        %1202 = vmatprep.subr.mxu0 0.0
        %1203 = vmatpush2.msra.mxu0 0.0
        %1204 = vmatprep.subr.mxu0 0.0
        %1205 = vmatpush2.msra.mxu0 0.0
        %1206 = vmatprep.subr.mxu0 0.0
        %1207 = vmatpush2.msra.mxu0 0.0
        %1208 = vmatprep.subr.mxu0 0.0
        %1209 = vmatpush2.msra.mxu0 0.0
        %1210 = vmatprep.subr.mxu0 0.0
        %1211 = vmatpush2.msra.mxu0 0.0
        %1212 = vmatprep.subr.mxu0 0.0
        %1213 = vmatpush2.msra.mxu0 0.0
        %1214 = vmatprep.subr.mxu0 0.0
        %1215 = vmatpush2.msra.mxu0 0.0
        %1216 = vmatprep.subr.mxu0 0.0
        %1217 = vmatpush2.msra.mxu0 0.0
        %1218 = vmatprep.subr.mxu0 0.0
        %1219 = vmatpush2.msra.mxu0 0.0
        %1220 = vmatprep.subr.mxu0 0.0
        %1221 = vmatpush2.msra.mxu0 0.0
        %1222 = vmatprep.subr.mxu0 0.0
        %1223 = vmatpush2.msra.mxu0 0.0
        %1224 = vmatprep.subr.mxu0 0.0
        %1225 = vmatpush2.msra.mxu0 0.0
        %1226 = vmatprep.subr.mxu0 0.0
        %1227 = vmatpush2.msra.mxu0 0.0
        %1228 = vmatprep.mubr.f32.mxu0 0.0
        %v1229 = vand.u32 %v969, 4294901760
        %1230 = vmatmul.mubr.f32.gmra.mxu0 %v1229
        %v1231 = vpop.f32.mrf.mxu0
        %v1232 = vadd.f32 %v1081, %v1231
        %v1233 = vpop.f32.mrf.mxu0
        %1234 = vdwg.mxu0
        %1235 = vmatprep.subr.mxu0 0.0
        %v1236 = vand.u32 %v985, 4294901760
        %v1237 = vsub.f32 %v985, %v1236
        %1238 = vmatpush1.msra.mxu0 %v1237
        %1239 = vmatprep.subr.mxu0 0.0
        %v1240 = vand.u32 %v984, 4294901760
        %v1241 = vsub.f32 %v984, %v1240
        %1242 = vmatpush1.msra.mxu0 %v1241
        %1243 = vmatprep.subr.mxu0 0.0
        %v1244 = vand.u32 %v983, 4294901760
        %v1245 = vsub.f32 %v983, %v1244
        %1246 = vmatpush1.msra.mxu0 %v1245
        %1247 = vmatprep.subr.mxu0 0.0
        %v1248 = vand.u32 %v982, 4294901760
        %v1249 = vsub.f32 %v982, %v1248
        %1250 = vmatpush1.msra.mxu0 %v1249
        %1251 = vmatprep.subr.mxu0 0.0
        %v1252 = vand.u32 %v981, 4294901760
        %v1253 = vsub.f32 %v981, %v1252
        %1254 = vmatpush1.msra.mxu0 %v1253
        %1255 = vmatprep.subr.mxu0 0.0
        %v1256 = vand.u32 %v980, 4294901760
        %v1257 = vsub.f32 %v980, %v1256
        %1258 = vmatpush1.msra.mxu0 %v1257
        %1259 = vmatprep.subr.mxu0 0.0
        %v1260 = vand.u32 %v979, 4294901760
        %v1261 = vsub.f32 %v979, %v1260
        %1262 = vmatpush1.msra.mxu0 %v1261
        %1263 = vmatprep.subr.mxu0 0.0
        %v1264 = vand.u32 %v978, 4294901760
        %v1265 = vsub.f32 %v978, %v1264
        %1266 = vmatpush1.msra.mxu0 %v1265
        %1267 = vmatprep.subr.mxu0 0.0
        %v1268 = vand.u32 %v977, 4294901760
        %v1269 = vsub.f32 %v977, %v1268
        %1270 = vmatpush1.msra.mxu0 %v1269
        %1271 = vmatprep.subr.mxu0 0.0
        %v1272 = vand.u32 %v976, 4294901760
        %v1273 = vsub.f32 %v976, %v1272
        %1274 = vmatpush1.msra.mxu0 %v1273
        %1275 = vmatprep.subr.mxu0 0.0
        %v1276 = vand.u32 %v975, 4294901760
        %v1277 = vsub.f32 %v975, %v1276
        %1278 = vmatpush1.msra.mxu0 %v1277
        %1279 = vmatprep.subr.mxu0 0.0
        %v1280 = vand.u32 %v974, 4294901760
        %v1281 = vsub.f32 %v974, %v1280
        %1282 = vmatpush1.msra.mxu0 %v1281
        %1283 = vmatprep.subr.mxu0 0.0
        %v1284 = vand.u32 %v973, 4294901760
        %v1285 = vsub.f32 %v973, %v1284
        %1286 = vmatpush1.msra.mxu0 %v1285
        %1287 = vmatprep.subr.mxu0 0.0
        %v1288 = vand.u32 %v972, 4294901760
        %v1289 = vsub.f32 %v972, %v1288
        %1290 = vmatpush1.msra.mxu0 %v1289
        %1291 = vmatprep.subr.mxu0 0.0
        %v1292 = vand.u32 %v971, 4294901760
        %v1293 = vsub.f32 %v971, %v1292
        %1294 = vmatpush1.msra.mxu0 %v1293
        %1295 = vmatprep.subr.mxu0 0.0
        %v1296 = vand.u32 %v970, 4294901760
        %v1297 = vsub.f32 %v970, %v1296
        %1298 = vmatpush1.msra.mxu0 %v1297
        %1299 = vmatprep.subr.mxu0 0.0
        %1300 = vmatpush2.msra.mxu0 0.0
        %1301 = vmatprep.subr.mxu0 0.0
        %1302 = vmatpush2.msra.mxu0 0.0
        %1303 = vmatprep.subr.mxu0 0.0
        %1304 = vmatpush2.msra.mxu0 0.0
        %1305 = vmatprep.subr.mxu0 0.0
        %1306 = vmatpush2.msra.mxu0 0.0
        %1307 = vmatprep.subr.mxu0 0.0
        %1308 = vmatpush2.msra.mxu0 0.0
        %1309 = vmatprep.subr.mxu0 0.0
        %1310 = vmatpush2.msra.mxu0 0.0
        %1311 = vmatprep.subr.mxu0 0.0
        %1312 = vmatpush2.msra.mxu0 0.0
        %1313 = vmatprep.subr.mxu0 0.0
        %1314 = vmatpush2.msra.mxu0 0.0
        %1315 = vmatprep.subr.mxu0 0.0
        %1316 = vmatpush2.msra.mxu0 0.0
        %1317 = vmatprep.subr.mxu0 0.0
        %1318 = vmatpush2.msra.mxu0 0.0
        %1319 = vmatprep.subr.mxu0 0.0
        %1320 = vmatpush2.msra.mxu0 0.0
        %1321 = vmatprep.subr.mxu0 0.0
        %1322 = vmatpush2.msra.mxu0 0.0
        %1323 = vmatprep.subr.mxu0 0.0
        %1324 = vmatpush2.msra.mxu0 0.0
        %1325 = vmatprep.subr.mxu0 0.0
        %1326 = vmatpush2.msra.mxu0 0.0
        %1327 = vmatprep.subr.mxu0 0.0
        %1328 = vmatpush2.msra.mxu0 0.0
        %1329 = vmatprep.subr.mxu0 0.0
        %1330 = vmatpush2.msra.mxu0 0.0
        %1331 = vmatprep.mubr.f32.mxu0 0.0
        %v1332 = vand.u32 %v969, 4294901760
        %v1333 = vsub.f32 %v969, %v1332
        %1334 = vmatmul.mubr.f32.gmra.mxu0 %v1333
        %v1335 = vpop.f32.mrf.mxu0
        %v1336 = vadd.f32 %v1232, %v1335
        %v1337 = vpop.f32.mrf.mxu0
        %1338 = vdwg.mxu0
        %1339 = vmatprep.subr.mxu0 0.0
        %v1340 = vand.u32 %v985, 4294901760
        %1341 = vmatpush1.msra.mxu0 %v1340
        %1342 = vmatprep.subr.mxu0 0.0
        %v1343 = vand.u32 %v984, 4294901760
        %1344 = vmatpush1.msra.mxu0 %v1343
        %1345 = vmatprep.subr.mxu0 0.0
        %v1346 = vand.u32 %v983, 4294901760
        %1347 = vmatpush1.msra.mxu0 %v1346
        %1348 = vmatprep.subr.mxu0 0.0
        %v1349 = vand.u32 %v982, 4294901760
        %1350 = vmatpush1.msra.mxu0 %v1349
        %1351 = vmatprep.subr.mxu0 0.0
        %v1352 = vand.u32 %v981, 4294901760
        %1353 = vmatpush1.msra.mxu0 %v1352
        %1354 = vmatprep.subr.mxu0 0.0
        %v1355 = vand.u32 %v980, 4294901760
        %1356 = vmatpush1.msra.mxu0 %v1355
        %1357 = vmatprep.subr.mxu0 0.0
        %v1358 = vand.u32 %v979, 4294901760
        %1359 = vmatpush1.msra.mxu0 %v1358
        %1360 = vmatprep.subr.mxu0 0.0
        %v1361 = vand.u32 %v978, 4294901760
        %1362 = vmatpush1.msra.mxu0 %v1361
        %1363 = vmatprep.subr.mxu0 0.0
        %v1364 = vand.u32 %v977, 4294901760
        %1365 = vmatpush1.msra.mxu0 %v1364
        %1366 = vmatprep.subr.mxu0 0.0
        %v1367 = vand.u32 %v976, 4294901760
        %1368 = vmatpush1.msra.mxu0 %v1367
        %1369 = vmatprep.subr.mxu0 0.0
        %v1370 = vand.u32 %v975, 4294901760
        %1371 = vmatpush1.msra.mxu0 %v1370
        %1372 = vmatprep.subr.mxu0 0.0
        %v1373 = vand.u32 %v974, 4294901760
        %1374 = vmatpush1.msra.mxu0 %v1373
        %1375 = vmatprep.subr.mxu0 0.0
        %v1376 = vand.u32 %v973, 4294901760
        %1377 = vmatpush1.msra.mxu0 %v1376
        %1378 = vmatprep.subr.mxu0 0.0
        %v1379 = vand.u32 %v972, 4294901760
        %1380 = vmatpush1.msra.mxu0 %v1379
        %1381 = vmatprep.subr.mxu0 0.0
        %v1382 = vand.u32 %v971, 4294901760
        %1383 = vmatpush1.msra.mxu0 %v1382
        %1384 = vmatprep.subr.mxu0 0.0
        %v1385 = vand.u32 %v970, 4294901760
        %1386 = vmatpush1.msra.mxu0 %v1385
        %1387 = vmatprep.subr.mxu0 0.0
        %1388 = vmatpush2.msra.mxu0 0.0
        %1389 = vmatprep.subr.mxu0 0.0
        %1390 = vmatpush2.msra.mxu0 0.0
        %1391 = vmatprep.subr.mxu0 0.0
        %1392 = vmatpush2.msra.mxu0 0.0
        %1393 = vmatprep.subr.mxu0 0.0
        %1394 = vmatpush2.msra.mxu0 0.0
        %1395 = vmatprep.subr.mxu0 0.0
        %1396 = vmatpush2.msra.mxu0 0.0
        %1397 = vmatprep.subr.mxu0 0.0
        %1398 = vmatpush2.msra.mxu0 0.0
        %1399 = vmatprep.subr.mxu0 0.0
        %1400 = vmatpush2.msra.mxu0 0.0
        %1401 = vmatprep.subr.mxu0 0.0
        %1402 = vmatpush2.msra.mxu0 0.0
        %1403 = vmatprep.subr.mxu0 0.0
        %1404 = vmatpush2.msra.mxu0 0.0
        %1405 = vmatprep.subr.mxu0 0.0
        %1406 = vmatpush2.msra.mxu0 0.0
        %1407 = vmatprep.subr.mxu0 0.0
        %1408 = vmatpush2.msra.mxu0 0.0
        %1409 = vmatprep.subr.mxu0 0.0
        %1410 = vmatpush2.msra.mxu0 0.0
        %1411 = vmatprep.subr.mxu0 0.0
        %1412 = vmatpush2.msra.mxu0 0.0
        %1413 = vmatprep.subr.mxu0 0.0
        %1414 = vmatpush2.msra.mxu0 0.0
        %1415 = vmatprep.subr.mxu0 0.0
        %1416 = vmatpush2.msra.mxu0 0.0
        %1417 = vmatprep.subr.mxu0 0.0
        %1418 = vmatpush2.msra.mxu0 0.0
        %1419 = vmatprep.mubr.f32.mxu0 0.0
        %v1420 = vand.u32 %v969, 4294901760
        %v1421 = vsub.f32 %v969, %v1420
        %v1422 = vand.u32 %v1421, 4294901760
        %1423 = vmatmul.mubr.f32.gmra.mxu0 %v1422
        %v1424 = vpop.f32.mrf.mxu0
        %v1425 = vadd.f32 %v1336, %v1424
        %v1426 = vpop.f32.mrf.mxu0
        %1427 = vdwg.mxu0
        %1428 = vmatprep.subr.mxu0 0.0
        %v1429 = vand.u32 %v985, 4294901760
        %v1430 = vsub.f32 %v985, %v1429
        %v1431 = vand.u32 %v1430, 4294901760
        %1432 = vmatpush1.msra.mxu0 %v1431
        %1433 = vmatprep.subr.mxu0 0.0
        %v1434 = vand.u32 %v984, 4294901760
        %v1435 = vsub.f32 %v984, %v1434
        %v1436 = vand.u32 %v1435, 4294901760
        %1437 = vmatpush1.msra.mxu0 %v1436
        %1438 = vmatprep.subr.mxu0 0.0
        %v1439 = vand.u32 %v983, 4294901760
        %v1440 = vsub.f32 %v983, %v1439
        %v1441 = vand.u32 %v1440, 4294901760
        %1442 = vmatpush1.msra.mxu0 %v1441
        %1443 = vmatprep.subr.mxu0 0.0
        %v1444 = vand.u32 %v982, 4294901760
        %v1445 = vsub.f32 %v982, %v1444
        %v1446 = vand.u32 %v1445, 4294901760
        %1447 = vmatpush1.msra.mxu0 %v1446
        %1448 = vmatprep.subr.mxu0 0.0
        %v1449 = vand.u32 %v981, 4294901760
        %v1450 = vsub.f32 %v981, %v1449
        %v1451 = vand.u32 %v1450, 4294901760
        %1452 = vmatpush1.msra.mxu0 %v1451
        %1453 = vmatprep.subr.mxu0 0.0
        %v1454 = vand.u32 %v980, 4294901760
        %v1455 = vsub.f32 %v980, %v1454
        %v1456 = vand.u32 %v1455, 4294901760
        %1457 = vmatpush1.msra.mxu0 %v1456
        %1458 = vmatprep.subr.mxu0 0.0
        %v1459 = vand.u32 %v979, 4294901760
        %v1460 = vsub.f32 %v979, %v1459
        %v1461 = vand.u32 %v1460, 4294901760
        %1462 = vmatpush1.msra.mxu0 %v1461
        %1463 = vmatprep.subr.mxu0 0.0
        %v1464 = vand.u32 %v978, 4294901760
        %v1465 = vsub.f32 %v978, %v1464
        %v1466 = vand.u32 %v1465, 4294901760
        %1467 = vmatpush1.msra.mxu0 %v1466
        %1468 = vmatprep.subr.mxu0 0.0
        %v1469 = vand.u32 %v977, 4294901760
        %v1470 = vsub.f32 %v977, %v1469
        %v1471 = vand.u32 %v1470, 4294901760
        %1472 = vmatpush1.msra.mxu0 %v1471
        %1473 = vmatprep.subr.mxu0 0.0
        %v1474 = vand.u32 %v976, 4294901760
        %v1475 = vsub.f32 %v976, %v1474
        %v1476 = vand.u32 %v1475, 4294901760
        %1477 = vmatpush1.msra.mxu0 %v1476
        %1478 = vmatprep.subr.mxu0 0.0
        %v1479 = vand.u32 %v975, 4294901760
        %v1480 = vsub.f32 %v975, %v1479
        %v1481 = vand.u32 %v1480, 4294901760
        %1482 = vmatpush1.msra.mxu0 %v1481
        %1483 = vmatprep.subr.mxu0 0.0
        %v1484 = vand.u32 %v974, 4294901760
        %v1485 = vsub.f32 %v974, %v1484
        %v1486 = vand.u32 %v1485, 4294901760
        %1487 = vmatpush1.msra.mxu0 %v1486
        %1488 = vmatprep.subr.mxu0 0.0
        %v1489 = vand.u32 %v973, 4294901760
        %v1490 = vsub.f32 %v973, %v1489
        %v1491 = vand.u32 %v1490, 4294901760
        %1492 = vmatpush1.msra.mxu0 %v1491
        %1493 = vmatprep.subr.mxu0 0.0
        %v1494 = vand.u32 %v972, 4294901760
        %v1495 = vsub.f32 %v972, %v1494
        %v1496 = vand.u32 %v1495, 4294901760
        %1497 = vmatpush1.msra.mxu0 %v1496
        %1498 = vmatprep.subr.mxu0 0.0
        %v1499 = vand.u32 %v971, 4294901760
        %v1500 = vsub.f32 %v971, %v1499
        %v1501 = vand.u32 %v1500, 4294901760
        %1502 = vmatpush1.msra.mxu0 %v1501
        %1503 = vmatprep.subr.mxu0 0.0
        %v1504 = vand.u32 %v970, 4294901760
        %v1505 = vsub.f32 %v970, %v1504
        %v1506 = vand.u32 %v1505, 4294901760
        %1507 = vmatpush1.msra.mxu0 %v1506
        %1508 = vmatprep.subr.mxu0 0.0
        %1509 = vmatpush2.msra.mxu0 0.0
        %1510 = vmatprep.subr.mxu0 0.0
        %1511 = vmatpush2.msra.mxu0 0.0
        %1512 = vmatprep.subr.mxu0 0.0
        %1513 = vmatpush2.msra.mxu0 0.0
        %1514 = vmatprep.subr.mxu0 0.0
        %1515 = vmatpush2.msra.mxu0 0.0
        %1516 = vmatprep.subr.mxu0 0.0
        %1517 = vmatpush2.msra.mxu0 0.0
        %1518 = vmatprep.subr.mxu0 0.0
        %1519 = vmatpush2.msra.mxu0 0.0
        %1520 = vmatprep.subr.mxu0 0.0
        %1521 = vmatpush2.msra.mxu0 0.0
        %1522 = vmatprep.subr.mxu0 0.0
        %1523 = vmatpush2.msra.mxu0 0.0
        %1524 = vmatprep.subr.mxu0 0.0
        %1525 = vmatpush2.msra.mxu0 0.0
        %1526 = vmatprep.subr.mxu0 0.0
        %1527 = vmatpush2.msra.mxu0 0.0
        %1528 = vmatprep.subr.mxu0 0.0
        %1529 = vmatpush2.msra.mxu0 0.0
        %1530 = vmatprep.subr.mxu0 0.0
        %1531 = vmatpush2.msra.mxu0 0.0
        %1532 = vmatprep.subr.mxu0 0.0
        %1533 = vmatpush2.msra.mxu0 0.0
        %1534 = vmatprep.subr.mxu0 0.0
        %1535 = vmatpush2.msra.mxu0 0.0
        %1536 = vmatprep.subr.mxu0 0.0
        %1537 = vmatpush2.msra.mxu0 0.0
        %1538 = vmatprep.subr.mxu0 0.0
        %1539 = vmatpush2.msra.mxu0 0.0
        %1540 = vmatprep.mubr.f32.mxu0 0.0
        %v1541 = vand.u32 %v969, 4294901760
        %1542 = vmatmul.mubr.f32.gmra.mxu0 %v1541
        %v1543 = vpop.f32.mrf.mxu0
        %v1544 = vadd.f32 %v1425, %v1543
        %v1545 = vpop.f32.mrf.mxu0
        %1546 = vdwg.mxu0
        %1547 = vmatprep.subr.mxu0 0.0
        %v1548 = vand.u32 %v985, 4294901760
        %1549 = vmatpush1.msra.mxu0 %v1548
        %1550 = vmatprep.subr.mxu0 0.0
        %v1551 = vand.u32 %v984, 4294901760
        %1552 = vmatpush1.msra.mxu0 %v1551
        %1553 = vmatprep.subr.mxu0 0.0
        %v1554 = vand.u32 %v983, 4294901760
        %1555 = vmatpush1.msra.mxu0 %v1554
        %1556 = vmatprep.subr.mxu0 0.0
        %v1557 = vand.u32 %v982, 4294901760
        %1558 = vmatpush1.msra.mxu0 %v1557
        %1559 = vmatprep.subr.mxu0 0.0
        %v1560 = vand.u32 %v981, 4294901760
        %1561 = vmatpush1.msra.mxu0 %v1560
        %1562 = vmatprep.subr.mxu0 0.0
        %v1563 = vand.u32 %v980, 4294901760
        %1564 = vmatpush1.msra.mxu0 %v1563
        %1565 = vmatprep.subr.mxu0 0.0
        %v1566 = vand.u32 %v979, 4294901760
        %1567 = vmatpush1.msra.mxu0 %v1566
        %1568 = vmatprep.subr.mxu0 0.0
        %v1569 = vand.u32 %v978, 4294901760
        %1570 = vmatpush1.msra.mxu0 %v1569
        %1571 = vmatprep.subr.mxu0 0.0
        %v1572 = vand.u32 %v977, 4294901760
        %1573 = vmatpush1.msra.mxu0 %v1572
        %1574 = vmatprep.subr.mxu0 0.0
        %v1575 = vand.u32 %v976, 4294901760
        %1576 = vmatpush1.msra.mxu0 %v1575
        %1577 = vmatprep.subr.mxu0 0.0
        %v1578 = vand.u32 %v975, 4294901760
        %1579 = vmatpush1.msra.mxu0 %v1578
        %1580 = vmatprep.subr.mxu0 0.0
        %v1581 = vand.u32 %v974, 4294901760
        %1582 = vmatpush1.msra.mxu0 %v1581
        %1583 = vmatprep.subr.mxu0 0.0
        %v1584 = vand.u32 %v973, 4294901760
        %1585 = vmatpush1.msra.mxu0 %v1584
        %1586 = vmatprep.subr.mxu0 0.0
        %v1587 = vand.u32 %v972, 4294901760
        %1588 = vmatpush1.msra.mxu0 %v1587
        %1589 = vmatprep.subr.mxu0 0.0
        %v1590 = vand.u32 %v971, 4294901760
        %1591 = vmatpush1.msra.mxu0 %v1590
        %1592 = vmatprep.subr.mxu0 0.0
        %v1593 = vand.u32 %v970, 4294901760
        %1594 = vmatpush1.msra.mxu0 %v1593
        %1595 = vmatprep.subr.mxu0 0.0
        %1596 = vmatpush2.msra.mxu0 0.0
        %1597 = vmatprep.subr.mxu0 0.0
        %1598 = vmatpush2.msra.mxu0 0.0
        %1599 = vmatprep.subr.mxu0 0.0
        %1600 = vmatpush2.msra.mxu0 0.0
        %1601 = vmatprep.subr.mxu0 0.0
        %1602 = vmatpush2.msra.mxu0 0.0
        %1603 = vmatprep.subr.mxu0 0.0
        %1604 = vmatpush2.msra.mxu0 0.0
        %1605 = vmatprep.subr.mxu0 0.0
        %1606 = vmatpush2.msra.mxu0 0.0
        %1607 = vmatprep.subr.mxu0 0.0
        %1608 = vmatpush2.msra.mxu0 0.0
        %1609 = vmatprep.subr.mxu0 0.0
        %1610 = vmatpush2.msra.mxu0 0.0
        %1611 = vmatprep.subr.mxu0 0.0
        %1612 = vmatpush2.msra.mxu0 0.0
        %1613 = vmatprep.subr.mxu0 0.0
        %1614 = vmatpush2.msra.mxu0 0.0
        %1615 = vmatprep.subr.mxu0 0.0
        %1616 = vmatpush2.msra.mxu0 0.0
        %1617 = vmatprep.subr.mxu0 0.0
        %1618 = vmatpush2.msra.mxu0 0.0
        %1619 = vmatprep.subr.mxu0 0.0
        %1620 = vmatpush2.msra.mxu0 0.0
        %1621 = vmatprep.subr.mxu0 0.0
        %1622 = vmatpush2.msra.mxu0 0.0
        %1623 = vmatprep.subr.mxu0 0.0
        %1624 = vmatpush2.msra.mxu0 0.0
        %1625 = vmatprep.subr.mxu0 0.0
        %1626 = vmatpush2.msra.mxu0 0.0
        %1627 = vmatprep.mubr.f32.mxu0 0.0
        %v1628 = vand.u32 %v969, 4294901760
        %1629 = vmatmul.mubr.f32.gmra.mxu0 %v1628
        %v1630 = vpop.f32.mrf.mxu0
        %v1631 = vadd.f32 %v1544, %v1630
        %v1632 = vpop.f32.mrf.mxu0
        %1633 = vdwg.mxu0
        %v1634 = vmax.f32 %v1631, 0.0
        %1635 = vst [vmem:[%s300] sm:$0xff] %v1634
        %s1636 = sand.u32 %s165, 1
        %s1637 = scalar_lea.sflag [#allocation4], %s1636
        %s1638 = sand.u32 %s165, 1
        %s1639 = smul.addr %s1638, 8
        %s1640 = scalar_lea.vmem [#allocation8], %s1639
        // Predicated region
        $region53: #{tpu_custom_call.1} parent=39 // pred_check
          %p1641 = pneg %p175
        $region54: #{tpu_custom_call.1} parent=39 // pred_check_branch
          %1643 = sbr.rel (%p1641) target = $region56
        $region55: #{tpu_custom_call.1} parent=39 // pred_region
          %s1645 = ssub.s32 128, 128
          %1646 = vsyncadd %s1637, %s1645
          %s1647 = sadd.s32 %s28, %s27
          %s1648 = smul.addr %s1647, 128
          %s1649 = scalar_lea.hbm %s5, %s1648
          %s1651 = sshll.u32 %s1640, 4
          %s1652 = int_to_ptr.vmem [resolvable:$true] %s1651
          %1654 = dma.vmem_to_hbm [thread:$0]  %s1652, 128, %s1649, %s1637
        $region56: #{tpu_custom_call.1} parent=39 // pred_fallthru
          _
      $region40: #{tpu_custom_call.1} parent=5 // pred_fallthru
        _
      %p1655 = scmp.le.s32.totalorder 2, %s18
      // Predicated region
      $region57: #{tpu_custom_call.1} parent=5 // pred_check
        %p1656 = pneg %p1655
      $region58: #{tpu_custom_call.1} parent=5 // pred_check_branch
        %1658 = sbr.rel (%p1656) target = $region60
      $region59: #{tpu_custom_call.1} parent=5 // pred_region
        %s1659 = ssub.s32 %s18, 2
        // Predicated region
        $region61: #{tpu_custom_call.1} parent=59 // pred_check
          %p1660 = pneg %p181
        $region62: #{tpu_custom_call.1} parent=59 // pred_check_branch
          %1662 = sbr.rel (%p1660) target = $region64
        $region63: #{tpu_custom_call.1} parent=59 // pred_region
          %s1663 = sand.u32 %s166, 1
          %s1664 = scalar_lea.sflag [#allocation4], %s1663
          %s1665 = sand.u32 %s166, 1
          %s1666 = smul.addr %s1665, 8
          %s1667 = scalar_lea.vmem [#allocation8], %s1666
          %1668 = dma.done %s1664, 128
        $region64: #{tpu_custom_call.1} parent=59 // pred_fallthru
          _
      $region60: #{tpu_custom_call.1} parent=5 // pred_fallthru
        _
    $region6: #{tpu_custom_call.1} parent=1 // loop_footer
      %s22 = sadd.s32 1, %s18
    $region7: #{tpu_custom_call.1} parent=1 // loop_footer_branch
      %17 = sbr.rel target = $region3
    $region8: #{tpu_custom_call.1} parent=1 // loop_exit
      _
    %1669 = vsyncpa [#allocation3], 1
    %s1670 = scalar_lea.sflag [#allocation3], 1
    %1671 = vsyncpa %s1670, 1
    %1672 = vsyncpa [#allocation6], 1
    %1673 = vsyncpa [#allocation4], 1
    %s1674 = scalar_lea.sflag [#allocation4], 1
    %1675 = vsyncpa %s1674, 1

</llo_original>
